<compile_context>
chip_gen: v5e
topology: v5e:2x2
jax: 0.10.0
libtpu: 0.0.40
codegen_flags: <defaults>
</compile_context>

<pallas_src>
import functools

import jax
import jax.numpy as jnp
from jax import lax
from jax.experimental import pallas as pl
from jax.experimental.pallas import tpu as pltpu

_LOG2E = 1.4426950408889634


def _vmem_limit_bytes():
    """Scoped-VMEM budget ~= 3/4 of physical VMEM, capped at 96 MiB.
    -> ~48 MiB on v7x (64 MiB/TC), 96 MiB on v5e/v6e (128 MiB)."""
    try:
        cap = int(pltpu.get_tpu_info().vmem_capacity_bytes)
    except Exception:
        cap = 64 * 1024 * 1024
    return int(max(32 * 1024 * 1024, min(96 * 1024 * 1024, (cap * 3) // 4)))


# ---------------------------------------------------------------------------
# Kernel 1: fused QKV projection -> head-major q (pre-scaled), k, v
# ---------------------------------------------------------------------------
def _qkv_proj_kernel(x_ref, w_ref, q_ref, k_ref, v_ref, *, n_heads, d_head, q_scale):
    """x_ref: (tq, dim) bf16; w_ref: (dim, 3*inner) bf16 with column order
    [chunk(q,k,v), head, d] (matches torch chunk + '(h d)' rearrange);
    q/k/v_ref: (n_heads, tq, d_head) bf16.

    One lane-wide MXU matmul per grid step; static lane splits afterwards."""
    inner = n_heads * d_head
    res = jnp.dot(x_ref[...], w_ref[...], preferred_element_type=jnp.float32)
    for hh in range(n_heads):
        o = hh * d_head
        # fold softmax scale * log2(e) into Q (kernel 2 then uses exp2)
        q_ref[hh] = (res[:, o:o + d_head] * q_scale).astype(q_ref.dtype)
        k_ref[hh] = res[:, inner + o:inner + o + d_head].astype(k_ref.dtype)
        v_ref[hh] = res[:, 2 * inner + o:2 * inner + o + d_head].astype(v_ref.dtype)


# ---------------------------------------------------------------------------
# Kernel 2: flash attention over RESIDENT K/V + fused output projection
# ---------------------------------------------------------------------------
def _flash_out_kernel(q_ref, k_ref, v_ref, *rest, n_heads, d_head, block_kv,
                      project_out):
    """q_ref: (h, tq, d) bf16, pre-scaled by scale*log2(e);
    k_ref/v_ref: (h, n, d) bf16 -- resident in VMEM for the whole batch element
    (their index maps are constant over the q-tile grid axis, so Pallas only
    DMAs them when the batch index changes);
    w_ref: (inner, dim) bf16; b_ref: (1, dim) f32; y_ref: (tq, dim)."""
    if project_out:
        w_ref, b_ref, y_ref = rest
    else:
        (y_ref,) = rest

    tq = q_ref.shape[1]
    n_kv = k_ref.shape[1]
    num_chunks = n_kv // block_kv

    head_outs = []
    for hh in range(n_heads):                       # small, unrolled
        q_h = q_ref[hh]                             # (tq, d) bf16

        def kv_step(j, carry, hh=hh, q_h=q_h):
            m_prev, l_prev, acc_prev = carry
            start = pl.multiple_of(j * block_kv, block_kv)
            k_blk = k_ref[hh, pl.ds(start, block_kv), :]   # (tk, d) bf16
            v_blk = v_ref[hh, pl.ds(start, block_kv), :]
            # scores in log2 units (scale*log2e already folded into q);
            # contract last axes -> no explicit K transpose.
            s = lax.dot_general(q_h, k_blk, (((1,), (1,)), ((), ())),
                                preferred_element_type=jnp.float32)  # (tq, tk)
            m_new = jnp.maximum(m_prev, jnp.max(s, axis=-1, keepdims=True))
            alpha = jnp.exp2(m_prev - m_new)
            p = jnp.exp2(s - m_new)
            l_new = alpha * l_prev + jnp.sum(p, axis=-1, keepdims=True)
            acc_new = alpha * acc_prev + jnp.dot(
                p.astype(v_blk.dtype), v_blk, preferred_element_type=jnp.float32)
            return m_new, l_new, acc_new

        init = (jnp.full((tq, 1), -jnp.inf, jnp.float32),
                jnp.zeros((tq, 1), jnp.float32),
                jnp.zeros((tq, d_head), jnp.float32))
        _, l_f, acc_f = lax.fori_loop(0, num_chunks, kv_step, init)

        out_h = acc_f * pl.reciprocal(l_f, approx=False)     # (tq, d) f32
        head_outs.append(out_h.astype(jnp.bfloat16))

    # lane-concatenate heads once per q tile -> full K=inner contraction depth
    out_cat = head_outs[0] if n_heads == 1 else jnp.concatenate(head_outs, axis=-1)

    if project_out:
        y = jnp.dot(out_cat, w_ref[...], preferred_element_type=jnp.float32)
        y_ref[...] = (y + b_ref[...]).astype(y_ref.dtype)
    else:
        # to_out is nn.Identity() (n_heads == 1 and d_head == dim)
        y_ref[...] = out_cat.astype(y_ref.dtype)


# ---------------------------------------------------------------------------
# Parameter preparation (done ONCE, not per forward call)
# ---------------------------------------------------------------------------
def prepare_attention_params(w_qkv, w_out, b_out, *, n_heads, d_head):
    """w_qkv: (3*inner, dim) torch layout (out, in); w_out: (dim, inner); b_out: (dim,)."""
    dim = w_qkv.shape[1]
    project_out = not (n_heads == 1 and d_head == dim)
    params = {
        # (dim, 3*inner): column order [chunk, head, d] -- matches torch forward.
        "w_qkv_t": jnp.transpose(w_qkv).astype(jnp.bfloat16),
        "w_out_t": None,
        "b_out": None,
        "project_out": project_out,
    }
    if project_out:
        params["w_out_t"] = jnp.transpose(w_out).astype(jnp.bfloat16)   # (inner, dim)
        params["b_out"] = b_out.reshape(1, dim).astype(jnp.float32)
    return params


# ---------------------------------------------------------------------------
# Forward wrapper
# ---------------------------------------------------------------------------
def attention_forward(x, params, *, n_heads, d_head, block_q=256, block_kv=128):
    b, n, dim = x.shape
    inner = n_heads * d_head
    tq = min(block_q, n)
    tk = min(block_kv, n)
    assert n % tq == 0 and n % tk == 0, "seq len must be divisible by tile sizes"
    scale = float(d_head) ** -0.5
    q_scale = scale * _LOG2E                       # softmax scale + log2(e), folded into Q

    vmem_limit = _vmem_limit_bytes()
    x_bf = x.astype(jnp.bfloat16)

    # --- 1) QKV projection: one (tq, dim) @ (dim, 3*inner) matmul per tile -----
    qkv_shape = jax.ShapeDtypeStruct((b, n_heads, n, d_head), jnp.bfloat16)
    q, k, v = pl.pallas_call(
        functools.partial(_qkv_proj_kernel, n_heads=n_heads, d_head=d_head,
                          q_scale=q_scale),
        out_shape=(qkv_shape, qkv_shape, qkv_shape),
        grid_spec=pltpu.PrefetchScalarGridSpec(
            num_scalar_prefetch=0,
            grid=(b, n // tq),
            in_specs=[
                pl.BlockSpec((None, tq, dim), lambda bb, qi: (bb, qi, 0)),
                # constant index map -> weight DMA'd once, stays resident
                pl.BlockSpec((dim, 3 * inner), lambda bb, qi: (0, 0)),
            ],
            out_specs=[
                pl.BlockSpec((None, n_heads, tq, d_head), lambda bb, qi: (bb, 0, qi, 0)),
                pl.BlockSpec((None, n_heads, tq, d_head), lambda bb, qi: (bb, 0, qi, 0)),
                pl.BlockSpec((None, n_heads, tq, d_head), lambda bb, qi: (bb, 0, qi, 0)),
            ],
        ),
        compiler_params=pltpu.CompilerParams(
            dimension_semantics=("parallel", "parallel"),
            vmem_limit_bytes=vmem_limit),
    )(x_bf, params["w_qkv_t"])

    # --- 2) fused flash attention + output projection, K/V resident per batch ---
    project_out = params["project_out"]
    in_specs = [
        pl.BlockSpec((None, n_heads, tq, d_head), lambda bb, qi: (bb, 0, qi, 0)),  # q tile
        pl.BlockSpec((None, n_heads, n, d_head), lambda bb, qi: (bb, 0, 0, 0)),    # K resident
        pl.BlockSpec((None, n_heads, n, d_head), lambda bb, qi: (bb, 0, 0, 0)),    # V resident
    ]
    args = [q, k, v]
    if project_out:
        in_specs += [
            pl.BlockSpec((inner, dim), lambda bb, qi: (0, 0)),    # w_out (resident)
            pl.BlockSpec((1, dim), lambda bb, qi: (0, 0)),        # bias
        ]
        args += [params["w_out_t"], params["b_out"]]
        out_dim = dim
    else:
        out_dim = inner

    y = pl.pallas_call(
        functools.partial(_flash_out_kernel, n_heads=n_heads, d_head=d_head,
                          block_kv=tk, project_out=project_out),
        out_shape=jax.ShapeDtypeStruct((b, n, out_dim), x.dtype),
        grid_spec=pltpu.PrefetchScalarGridSpec(
            num_scalar_prefetch=0,
            grid=(b, n // tq),
            in_specs=in_specs,
            out_specs=pl.BlockSpec((None, tq, out_dim), lambda bb, qi: (bb, qi, 0)),
        ),
        compiler_params=pltpu.CompilerParams(
            dimension_semantics=("parallel", "parallel"),
            vmem_limit_bytes=vmem_limit),
    )(*args)
    return y


# ---------------------------------------------------------------------------
# Plain-JAX (f32) reference mirroring the PyTorch forward (eval mode)
# ---------------------------------------------------------------------------
def attention_reference(x, w_qkv, w_out, b_out, *, n_heads, d_head):
    b, n, dim = x.shape
    inner = n_heads * d_head
    scale = float(d_head) ** -0.5
    qkv = x @ w_qkv.T                                   # (b, n, 3*inner)
    q, k, v = jnp.split(qkv, 3, axis=-1)

    def split_heads(t):                                 # 'b n (h d) -> b h n d'
        return jnp.transpose(t.reshape(b, n, n_heads, d_head), (0, 2, 1, 3))

    q, k, v = map(split_heads, (q, k, v))
    dots = jnp.einsum('bhid,bhjd->bhij', q, k) * scale
    attn = jax.nn.softmax(dots, axis=-1)
    out = jnp.einsum('bhij,bhjd->bhid', attn, v)
    out = jnp.transpose(out, (0, 2, 1, 3)).reshape(b, n, inner)
    return out @ w_out.T + b_out


if __name__ == "__main__":
    # Small but representative: lane-dense dim, 2 kv chunks inside the kernel.
    batch, seq, dim = 2, 256, 128
    n_heads, d_head = 2, 64
    inner = n_heads * d_head

    key = jax.random.PRNGKey(0)
    k_x, k_qkv, k_out, k_b = jax.random.split(key, 4)

    x = jax.random.normal(k_x, (batch, seq, dim), dtype=jnp.float32)
    # PyTorch nn.Linear weight layout (out_features, in_features).
    w_qkv = jax.random.normal(k_qkv, (3 * inner, dim), dtype=jnp.float32) * (dim ** -0.5)
    w_out = jax.random.normal(k_out, (dim, inner), dtype=jnp.float32) * (inner ** -0.5)
    b_out = jax.random.normal(k_b, (dim,), dtype=jnp.float32) * 0.01

    params = prepare_attention_params(w_qkv, w_out, b_out,
                                      n_heads=n_heads, d_head=d_head)
    out = attention_forward(x, params, n_heads=n_heads, d_head=d_head)
    out = jax.block_until_ready(out)

    ref = attention_reference(x, w_qkv, w_out, b_out,
                              n_heads=n_heads, d_head=d_head)
    assert out.shape == (batch, seq, dim)
    max_err = float(jnp.max(jnp.abs(out - ref)))
    # bf16 MXU operands (f32 accumulate) -> loosened tolerance vs f32 reference.
    assert jnp.allclose(out, ref, atol=5e-2, rtol=5e-2), (
        f"mismatch vs reference, max abs err={max_err}")

    print("KERNEL_OK")
</pallas_src>

<mosaic_0001>
module attributes {stable_mosaic.version = 11 : i64} {
  func.func @_qkv_proj_kernel(%arg0: i32, %arg1: i32, %arg2: memref<1x256x128xbf16, #tpu.memory_space<vmem>>, %arg3: memref<128x384xbf16, #tpu.memory_space<vmem>>, %arg4: memref<1x2x256x64xbf16, #tpu.memory_space<vmem>>, %arg5: memref<1x2x256x64xbf16, #tpu.memory_space<vmem>>, %arg6: memref<1x2x256x64xbf16, #tpu.memory_space<vmem>>) attributes {dimension_semantics = [#tpu.dimension_semantics<parallel>, #tpu.dimension_semantics<parallel>], iteration_bounds = array<i64: 2, 1>, scalar_prefetch = 0 : i64, scratch_operands = 0 : i64, tpu.core_type = #tpu.core_type<tc>, window_params = [{transform_indices = @transform_0, window_bounds = array<i64: 1, 256, 128>}, {pipeline_mode = #tpu.pipeline_mode<synchronous>, transform_indices = @transform_1, window_bounds = array<i64: 128, 384>}, {transform_indices = @transform_2, window_bounds = array<i64: 1, 2, 256, 64>}, {transform_indices = @transform_3, window_bounds = array<i64: 1, 2, 256, 64>}, {transform_indices = @transform_4, window_bounds = array<i64: 1, 2, 256, 64>}]} {
    %c0 = arith.constant 0 : index
    %c0_0 = arith.constant 0 : index
    %c0_1 = arith.constant 0 : index
    %0 = vector.load %arg2[%c0, %c0_0, %c0_1] : memref<1x256x128xbf16, #tpu.memory_space<vmem>>, vector<1x256x128xbf16>
    %1 = vector.shape_cast %0 : vector<1x256x128xbf16> to vector<256x128xbf16>
    %c0_2 = arith.constant 0 : index
    %c0_3 = arith.constant 0 : index
    %2 = vector.load %arg3[%c0_2, %c0_3] : memref<128x384xbf16, #tpu.memory_space<vmem>>, vector<128x384xbf16>
    %cst = arith.constant dense<0.000000e+00> : vector<256x384xf32>
    %3 = tpu.matmul %1, %2, %cst {dimension_numbers = #tpu.dot_dimension_numbers<[1], [0], [0], [1], [0, 0, 1, 1], [], []>} : vector<256x128xbf16>, vector<128x384xbf16>, vector<256x384xf32> -> vector<256x384xf32>
    %4 = vector.extract_strided_slice %3 {offsets = [0, 0], sizes = [256, 64], strides = [1, 1]} : vector<256x384xf32> to vector<256x64xf32>
    %cst_4 = arith.constant 0.180336878 : f32
    %5 = vector.broadcast %cst_4 : f32 to vector<256x64xf32>
    %6 = arith.mulf %4, %5 : vector<256x64xf32>
    %7 = arith.truncf %6 : vector<256x64xf32> to vector<256x64xbf16>
    %c0_5 = arith.constant 0 : index
    %c0_6 = arith.constant 0 : index
    %c0_7 = arith.constant 0 : index
    %c0_8 = arith.constant 0 : index
    %8 = vector.load %arg4[%c0_5, %c0_6, %c0_7, %c0_8] : memref<1x2x256x64xbf16, #tpu.memory_space<vmem>>, vector<1x1x256x64xbf16>
    %9 = vector.shape_cast %8 : vector<1x1x256x64xbf16> to vector<256x64xbf16>
    %10 = vector.shape_cast %7 : vector<256x64xbf16> to vector<1x1x256x64xbf16>
    tpu.vector_store %arg4[%c0_5, %c0_6, %c0_7, %c0_8], %10 {strides = array<i32>} : memref<1x2x256x64xbf16, #tpu.memory_space<vmem>>, vector<1x1x256x64xbf16>,
    %11 = vector.extract_strided_slice %3 {offsets = [0, 128], sizes = [256, 64], strides = [1, 1]} : vector<256x384xf32> to vector<256x64xf32>
    %12 = arith.truncf %11 : vector<256x64xf32> to vector<256x64xbf16>
    %c0_9 = arith.constant 0 : index
    %c0_10 = arith.constant 0 : index
    %c0_11 = arith.constant 0 : index
    %c0_12 = arith.constant 0 : index
    %13 = vector.load %arg5[%c0_9, %c0_10, %c0_11, %c0_12] : memref<1x2x256x64xbf16, #tpu.memory_space<vmem>>, vector<1x1x256x64xbf16>
    %14 = vector.shape_cast %13 : vector<1x1x256x64xbf16> to vector<256x64xbf16>
    %15 = vector.shape_cast %12 : vector<256x64xbf16> to vector<1x1x256x64xbf16>
    tpu.vector_store %arg5[%c0_9, %c0_10, %c0_11, %c0_12], %15 {strides = array<i32>} : memref<1x2x256x64xbf16, #tpu.memory_space<vmem>>, vector<1x1x256x64xbf16>,
    %16 = vector.extract_strided_slice %3 {offsets = [0, 256], sizes = [256, 64], strides = [1, 1]} : vector<256x384xf32> to vector<256x64xf32>
    %17 = arith.truncf %16 : vector<256x64xf32> to vector<256x64xbf16>
    %c0_13 = arith.constant 0 : index
    %c0_14 = arith.constant 0 : index
    %c0_15 = arith.constant 0 : index
    %c0_16 = arith.constant 0 : index
    %18 = vector.load %arg6[%c0_13, %c0_14, %c0_15, %c0_16] : memref<1x2x256x64xbf16, #tpu.memory_space<vmem>>, vector<1x1x256x64xbf16>
    %19 = vector.shape_cast %18 : vector<1x1x256x64xbf16> to vector<256x64xbf16>
    %20 = vector.shape_cast %17 : vector<256x64xbf16> to vector<1x1x256x64xbf16>
    tpu.vector_store %arg6[%c0_13, %c0_14, %c0_15, %c0_16], %20 {strides = array<i32>} : memref<1x2x256x64xbf16, #tpu.memory_space<vmem>>, vector<1x1x256x64xbf16>,
    %21 = vector.extract_strided_slice %3 {offsets = [0, 64], sizes = [256, 64], strides = [1, 1]} : vector<256x384xf32> to vector<256x64xf32>
    %cst_17 = arith.constant 0.180336878 : f32
    %22 = vector.broadcast %cst_17 : f32 to vector<256x64xf32>
    %23 = arith.mulf %21, %22 : vector<256x64xf32>
    %24 = arith.truncf %23 : vector<256x64xf32> to vector<256x64xbf16>
    %c0_18 = arith.constant 0 : index
    %c1 = arith.constant 1 : index
    %c0_19 = arith.constant 0 : index
    %c0_20 = arith.constant 0 : index
    %25 = vector.load %arg4[%c0_18, %c1, %c0_19, %c0_20] : memref<1x2x256x64xbf16, #tpu.memory_space<vmem>>, vector<1x1x256x64xbf16>
    %26 = vector.shape_cast %25 : vector<1x1x256x64xbf16> to vector<256x64xbf16>
    %27 = vector.shape_cast %24 : vector<256x64xbf16> to vector<1x1x256x64xbf16>
    tpu.vector_store %arg4[%c0_18, %c1, %c0_19, %c0_20], %27 {strides = array<i32>} : memref<1x2x256x64xbf16, #tpu.memory_space<vmem>>, vector<1x1x256x64xbf16>,
    %28 = vector.extract_strided_slice %3 {offsets = [0, 192], sizes = [256, 64], strides = [1, 1]} : vector<256x384xf32> to vector<256x64xf32>
    %29 = arith.truncf %28 : vector<256x64xf32> to vector<256x64xbf16>
    %c0_21 = arith.constant 0 : index
    %c1_22 = arith.constant 1 : index
    %c0_23 = arith.constant 0 : index
    %c0_24 = arith.constant 0 : index
    %30 = vector.load %arg5[%c0_21, %c1_22, %c0_23, %c0_24] : memref<1x2x256x64xbf16, #tpu.memory_space<vmem>>, vector<1x1x256x64xbf16>
    %31 = vector.shape_cast %30 : vector<1x1x256x64xbf16> to vector<256x64xbf16>
    %32 = vector.shape_cast %29 : vector<256x64xbf16> to vector<1x1x256x64xbf16>
    tpu.vector_store %arg5[%c0_21, %c1_22, %c0_23, %c0_24], %32 {strides = array<i32>} : memref<1x2x256x64xbf16, #tpu.memory_space<vmem>>, vector<1x1x256x64xbf16>,
    %33 = vector.extract_strided_slice %3 {offsets = [0, 320], sizes = [256, 64], strides = [1, 1]} : vector<256x384xf32> to vector<256x64xf32>
    %34 = arith.truncf %33 : vector<256x64xf32> to vector<256x64xbf16>
    %c0_25 = arith.constant 0 : index
    %c1_26 = arith.constant 1 : index
    %c0_27 = arith.constant 0 : index
    %c0_28 = arith.constant 0 : index
    %35 = vector.load %arg6[%c0_25, %c1_26, %c0_27, %c0_28] : memref<1x2x256x64xbf16, #tpu.memory_space<vmem>>, vector<1x1x256x64xbf16>
    %36 = vector.shape_cast %35 : vector<1x1x256x64xbf16> to vector<256x64xbf16>
    %37 = vector.shape_cast %34 : vector<256x64xbf16> to vector<1x1x256x64xbf16>
    tpu.vector_store %arg6[%c0_25, %c1_26, %c0_27, %c0_28], %37 {strides = array<i32>} : memref<1x2x256x64xbf16, #tpu.memory_space<vmem>>, vector<1x1x256x64xbf16>,
    return
  }
  func.func @transform_0(%arg0: i32, %arg1: i32) -> (i32, i32, i32) {
    %c0_i32 = arith.constant 0 : i32
    %c0_i32_0 = arith.constant 0 : i32
    return %arg0, %arg1, %c0_i32 : i32, i32, i32
  }
  func.func @transform_1(%arg0: i32, %arg1: i32) -> (i32, i32) {
    %c0_i32 = arith.constant 0 : i32
    %c0_i32_0 = arith.constant 0 : i32
    %c0_i32_1 = arith.constant 0 : i32
    return %c0_i32, %c0_i32_0 : i32, i32
  }
  func.func @transform_2(%arg0: i32, %arg1: i32) -> (i32, i32, i32, i32) {
    %c0_i32 = arith.constant 0 : i32
    %c0_i32_0 = arith.constant 0 : i32
    %c0_i32_1 = arith.constant 0 : i32
    return %arg0, %c0_i32, %arg1, %c0_i32_0 : i32, i32, i32, i32
  }
  func.func @transform_3(%arg0: i32, %arg1: i32) -> (i32, i32, i32, i32) {
    %c0_i32 = arith.constant 0 : i32
    %c0_i32_0 = arith.constant 0 : i32
    %c0_i32_1 = arith.constant 0 : i32
    return %arg0, %c0_i32, %arg1, %c0_i32_0 : i32, i32, i32, i32
  }
  func.func @transform_4(%arg0: i32, %arg1: i32) -> (i32, i32, i32, i32) {
    %c0_i32 = arith.constant 0 : i32
    %c0_i32_0 = arith.constant 0 : i32
    %c0_i32_1 = arith.constant 0 : i32
    return %arg0, %c0_i32, %arg1, %c0_i32_0 : i32, i32, i32, i32
  }
}

</mosaic_0001>

<llo_original>
// kernel: tpu_custom_call.1
$region0: #{tpu_custom_call.1}
  #allocation0 [shape = 'u32[]', space=smem, size = 0x4, offset = 0x4, fixed_abs, tag = 'smem constant byte address 0x4 - core index']
  #allocation1 [shape = 'u32[72,128]{1,0:T(1,128)}', space=vmem, size = 0x9000, scoped, tag = 'internal scratch']
  %s0 = inlined_call_operand.hbm [shape: bf16[2,256,128], index: 0, kind: input, shape index: {}]
  %s1 = inlined_call_operand.hbm [shape: bf16[128,384], index: 1, kind: input, shape index: {}]
  %s2 = inlined_call_operand.vmem [shape: bf16[2,2,256,64], index: 2, kind: output, shape index: {0}]
  %s3 = inlined_call_operand.vmem [shape: bf16[2,2,256,64], index: 3, kind: output, shape index: {1}]
  %s4 = inlined_call_operand.vmem [shape: bf16[2,2,256,64], index: 4, kind: output, shape index: {2}]
  %5 = xla_tuple %s2, %s3, %s4
  %s6 = sld [smem:[#allocation0]]
  $region65: #{tpu_custom_call.1} parent=0
    _
  %s8 = ssub.s32 1, %s6
  %s9 = scalar_select 0, %s8, %s6
  $region1: #{tpu_custom_call.1} parent=0
    #allocation2 [shape = 'u8[131072]{0}', space=vmem, size = 0x20000, scoped, tag = 'input window, operand 0']
    #allocation3 [shape = 's32[2]{0}', space=sflag, size = 0x8, scoped, tag = 'scoped memory for tpu_custom_call.1']
    #allocation4 [shape = 'u8[98304]{0}', space=vmem, size = 0x18000, scoped, tag = 'input window, operand 1, single buffered']
    #allocation5 [shape = 's32[1]{0}', space=sflag, size = 0x4, scoped, tag = 'scoped memory for tpu_custom_call.1']
    %10 = vsyncpa [#allocation3], 0
    %s11 = scalar_lea.sflag [#allocation3], 1
    %12 = vsyncpa %s11, 0
    %13 = vsyncpa [#allocation5], 0
    loop: start=0, step=1, limit=4
    $region2: #{tpu_custom_call.1} parent=1 // loop_pre_header
      _
    $region3: #{tpu_custom_call.1} parent=1 // loop_header
      %s15 = sphi 0, %s19
      %p16 = scmp.ge.s32.totalorder %s15, 4
      %s22 = sphi 0, %s34
      %s23 = sphi 0, %s30
      %s24 = sphi 0, %s22
      %s25 = sphi 0, %s23
      %s26 = sphi 0, %s24
      %s27 = sphi 0, %s25
      %s39 = sphi 0, %s41
      %s42 = sphi 0, %s39
      %s43 = sphi 0, %s42
      %s59 = sphi 0, %s43
      %s63 = sphi 0, %s63
      %s65 = sphi 0, %s63
      %s66 = sphi 0, %s65
      %s80 = sphi 0, %s66
      %s88 = sphi 0, %s90
      %s91 = sphi 0, %s88
      %s92 = sphi 0, %s91
      %s108 = sphi 0, %s92
      %s116 = sphi 0, %s118
      %s119 = sphi 0, %s116
      %s120 = sphi 0, %s119
      %s136 = sphi 0, %s120
      %s144 = sphi 0, %s146
      %s147 = sphi 0, %s144
      %s148 = sphi 0, %s147
      %s164 = sphi 0, %s148
    $region4: #{tpu_custom_call.1} parent=1 // loop_header_branch
      %18 = sbr.rel (%p16) target = $region8
    $region5: #{tpu_custom_call.1} parent=1 // loop_body
      %s20 = ssub.s32 %s15, 1
      %s21 = ssub.s32 %s15, 2
      %s28 = sadd.s32 1, %s23
      %p29 = scmp.ge.s32.totalorder %s28, 1
      %s30 = scalar_select %p29, 0, %s28
      %s31 = sadd.s32 1, %s22
      %s32 = scalar_select %p29, %s31, %s22
      %p33 = scmp.ge.s32.totalorder %s32, 2
      %s34 = scalar_select %p33, 0, %s32
      %s35 = ssub.s32 %s22, %s34
      %s36 = ssub.s32 %s23, %s30
      %s37 = sor.u32 %s35, %s36
      %p38 = scmp.eq.s32.totalorder %s37, 0
      %s40 = sadd.s32 %s39, 1
      %s41 = scalar_select %p38, %s39, %s40
      %p44 = pneg %p38
      %p45 = scmp.eq.s32.totalorder %s15, 1
      %p46 = por %p44, %p45
      %p47 = scmp.ne.s32.totalorder %s39, %s42
      %p48 = scmp.eq.s32.totalorder %s15, 0
      %p49 = por %p47, %p48
      %p50 = scmp.ne.s32.totalorder %s39, %s42
      %p51 = scmp.eq.s32.totalorder %s20, 1
      %p52 = por %p50, %p51
      %p53 = scmp.ne.s32.totalorder %s42, %s43
      %p54 = scmp.eq.s32.totalorder %s20, 0
      %p55 = por %p53, %p54
      %p56 = scmp.ne.s32.totalorder %s42, %s43
      %p57 = scmp.eq.s32.totalorder %s21, 1
      %p58 = por %p56, %p57
      %p60 = scmp.ne.s32.totalorder %s43, %s59
      %p61 = scmp.eq.s32.totalorder %s21, 0
      %p62 = por %p60, %p61
      %s64 = sadd.s32 %s63, 1
      %p67 = scmp.eq.s32.totalorder %s15, 1
      %p68 = scmp.ne.s32.totalorder %s63, %s65
      %p69 = scmp.eq.s32.totalorder %s15, 0
      %p70 = por %p68, %p69
      %p71 = scmp.ne.s32.totalorder %s63, %s65
      %p72 = scmp.eq.s32.totalorder %s20, 1
      %p73 = por %p71, %p72
      %p74 = scmp.ne.s32.totalorder %s65, %s66
      %p75 = scmp.eq.s32.totalorder %s20, 0
      %p76 = por %p74, %p75
      %p77 = scmp.ne.s32.totalorder %s65, %s66
      %p78 = scmp.eq.s32.totalorder %s21, 1
      %p79 = por %p77, %p78
      %p81 = scmp.ne.s32.totalorder %s66, %s80
      %p82 = scmp.eq.s32.totalorder %s21, 0
      %p83 = por %p81, %p82
      %s84 = ssub.s32 %s22, %s34
      %s85 = ssub.s32 %s23, %s30
      %s86 = sor.u32 %s84, %s85
      %p87 = scmp.eq.s32.totalorder %s86, 0
      %s89 = sadd.s32 %s88, 1
      %s90 = scalar_select %p87, %s88, %s89
      %p93 = pneg %p87
      %p94 = scmp.eq.s32.totalorder %s15, 1
      %p95 = por %p93, %p94
      %p96 = scmp.ne.s32.totalorder %s88, %s91
      %p97 = scmp.eq.s32.totalorder %s15, 0
      %p98 = por %p96, %p97
      %p99 = scmp.ne.s32.totalorder %s88, %s91
      %p100 = scmp.eq.s32.totalorder %s20, 1
      %p101 = por %p99, %p100
      %p102 = scmp.ne.s32.totalorder %s91, %s92
      %p103 = scmp.eq.s32.totalorder %s20, 0
      %p104 = por %p102, %p103
      %p105 = scmp.ne.s32.totalorder %s91, %s92
      %p106 = scmp.eq.s32.totalorder %s21, 1
      %p107 = por %p105, %p106
      %p109 = scmp.ne.s32.totalorder %s92, %s108
      %p110 = scmp.eq.s32.totalorder %s21, 0
      %p111 = por %p109, %p110
      %s112 = ssub.s32 %s22, %s34
      %s113 = ssub.s32 %s23, %s30
      %s114 = sor.u32 %s112, %s113
      %p115 = scmp.eq.s32.totalorder %s114, 0
      %s117 = sadd.s32 %s116, 1
      %s118 = scalar_select %p115, %s116, %s117
      %p121 = pneg %p115
      %p122 = scmp.eq.s32.totalorder %s15, 1
      %p123 = por %p121, %p122
      %p124 = scmp.ne.s32.totalorder %s116, %s119
      %p125 = scmp.eq.s32.totalorder %s15, 0
      %p126 = por %p124, %p125
      %p127 = scmp.ne.s32.totalorder %s116, %s119
      %p128 = scmp.eq.s32.totalorder %s20, 1
      %p129 = por %p127, %p128
      %p130 = scmp.ne.s32.totalorder %s119, %s120
      %p131 = scmp.eq.s32.totalorder %s20, 0
      %p132 = por %p130, %p131
      %p133 = scmp.ne.s32.totalorder %s119, %s120
      %p134 = scmp.eq.s32.totalorder %s21, 1
      %p135 = por %p133, %p134
      %p137 = scmp.ne.s32.totalorder %s120, %s136
      %p138 = scmp.eq.s32.totalorder %s21, 0
      %p139 = por %p137, %p138
      %s140 = ssub.s32 %s22, %s34
      %s141 = ssub.s32 %s23, %s30
      %s142 = sor.u32 %s140, %s141
      %p143 = scmp.eq.s32.totalorder %s142, 0
      %s145 = sadd.s32 %s144, 1
      %s146 = scalar_select %p143, %s144, %s145
      %p149 = pneg %p143
      %p150 = scmp.eq.s32.totalorder %s15, 1
      %p151 = por %p149, %p150
      %p152 = scmp.ne.s32.totalorder %s144, %s147
      %p153 = scmp.eq.s32.totalorder %s15, 0
      %p154 = por %p152, %p153
      %p155 = scmp.ne.s32.totalorder %s144, %s147
      %p156 = scmp.eq.s32.totalorder %s20, 1
      %p157 = por %p155, %p156
      %p158 = scmp.ne.s32.totalorder %s147, %s148
      %p159 = scmp.eq.s32.totalorder %s20, 0
      %p160 = por %p158, %p159
      %p161 = scmp.ne.s32.totalorder %s147, %s148
      %p162 = scmp.eq.s32.totalorder %s21, 1
      %p163 = por %p161, %p162
      %p165 = scmp.ne.s32.totalorder %s148, %s164
      %p166 = scmp.eq.s32.totalorder %s21, 0
      %p167 = por %p165, %p166
      %p168 = scmp.le.s32.totalorder 1, %s15
      %p169 = scmp.lt.s32.totalorder %s15, 3
      %p170 = pnand %p168, %p169
      %p171 = pneg %p170
      // Predicated region
      $region9: #{tpu_custom_call.1} parent=5 // pred_check
        _
      $region10: #{tpu_custom_call.1} parent=5 // pred_check_branch
        %173 = sbr.rel (%p170) target = $region12
      $region11: #{tpu_custom_call.1} parent=5 // pred_region
        %s174 = ssub.s32 %s15, 1
        // Predicated region
        $region13: #{tpu_custom_call.1} parent=11 // pred_check
          %p175 = pneg %p76
        $region14: #{tpu_custom_call.1} parent=11 // pred_check_branch
          %177 = sbr.rel (%p175) target = $region16
        $region15: #{tpu_custom_call.1} parent=11 // pred_region
          %179 = vsyncadd [#allocation5], 0
          %s180 = sshll.u32 %s1, 4
          %s181 = int_to_ptr.hbm [resolvable:$true] %s180
          %s182 = sshll.u32 [#allocation4], 4
          %s183 = int_to_ptr.vmem [resolvable:$true] %s182
          %188 = dma.hbm_to_vmem [thread:$0]  %s181, 3072, %s183, [#allocation5], 192, 192, 12
        $region16: #{tpu_custom_call.1} parent=11 // pred_fallthru
          _
      $region12: #{tpu_custom_call.1} parent=5 // pred_fallthru
        _
      %p189 = scmp.lt.s32.totalorder %s15, 2
      // Predicated region
      $region17: #{tpu_custom_call.1} parent=5 // pred_check
        %p190 = pneg %p189
      $region18: #{tpu_custom_call.1} parent=5 // pred_check_branch
        %192 = sbr.rel (%p190) target = $region20
      $region19: #{tpu_custom_call.1} parent=5 // pred_region
        // Predicated region
        $region21: #{tpu_custom_call.1} parent=19 // pred_check
          %p193 = pneg %p49
        $region22: #{tpu_custom_call.1} parent=19 // pred_check_branch
          %195 = sbr.rel (%p193) target = $region24
        $region23: #{tpu_custom_call.1} parent=19 // pred_region
          %s196 = sand.u32 %s39, 1
          %s197 = scalar_lea.sflag [#allocation3], %s196
          %s198 = sand.u32 %s39, 1
          %s199 = smul.addr %s198, 128
          %s200 = scalar_lea.vmem [#allocation2], %s199
          %s201 = smul.u32 32, %s23
          %203 = vsyncadd %s197, 0
          %s204 = smul.addr %s22, 32
          %s205 = sadd.s32 %s201, %s204
          %s206 = smul.addr %s205, 4
          %s207 = scalar_lea.hbm %s0, %s206
          %s208 = sshll.u32 %s207, 4
          %s209 = int_to_ptr.hbm [resolvable:$true] %s208
          %s210 = sshll.u32 %s200, 4
          %s211 = int_to_ptr.vmem [resolvable:$true] %s210
          %216 = dma.hbm_to_vmem [thread:$0]  %s209, 2048, %s211, %s197, 64, 64, 4
        $region24: #{tpu_custom_call.1} parent=19 // pred_fallthru
          _
      $region20: #{tpu_custom_call.1} parent=5 // pred_fallthru
        _
      %p217 = scmp.le.s32.totalorder 1, %s15
      %p218 = scmp.lt.s32.totalorder %s15, 3
      %p219 = pnand %p217, %p218
      %p220 = pneg %p219
      // Predicated region
      $region25: #{tpu_custom_call.1} parent=5 // pred_check
        _
      $region26: #{tpu_custom_call.1} parent=5 // pred_check_branch
        %222 = sbr.rel (%p219) target = $region28
      $region27: #{tpu_custom_call.1} parent=5 // pred_region
        %s223 = ssub.s32 %s15, 1
        %s224 = sand.u32 %s42, 1
        %s225 = scalar_lea.sflag [#allocation3], %s224
        %s226 = sand.u32 %s42, 1
        %s227 = smul.addr %s226, 128
        %s228 = scalar_lea.vmem [#allocation2], %s227
        // Predicated region
        $region29: #{tpu_custom_call.1} parent=27 // pred_check
          %p229 = pneg %p55
        $region30: #{tpu_custom_call.1} parent=27 // pred_check_branch
          %231 = sbr.rel (%p229) target = $region32
        $region31: #{tpu_custom_call.1} parent=27 // pred_region
          %233 = dma.done %s225, 2048
        $region32: #{tpu_custom_call.1} parent=27 // pred_fallthru
          _
        // Predicated region
        $region33: #{tpu_custom_call.1} parent=27 // pred_check
          %p234 = pneg %p76
        $region34: #{tpu_custom_call.1} parent=27 // pred_check_branch
          %236 = sbr.rel (%p234) target = $region36
        $region35: #{tpu_custom_call.1} parent=27 // pred_region
          %238 = dma.done [#allocation5], 3072
        $region36: #{tpu_custom_call.1} parent=27 // pred_fallthru
          _
        %s239 = sand.u32 %s42, 1
        %s240 = scalar_lea.sflag [#allocation3], %s239
        %s241 = sand.u32 %s42, 1
        %s242 = smul.addr %s241, 128
        %s243 = scalar_lea.vmem [#allocation2], %s242
        %p244 = pneg %p55
        %p245 = pneg %p52
        %p246 = pneg %p76
        %p247 = pneg %p73
        %p248 = pneg %p104
        %p249 = pneg %p101
        %s250 = smul.u32 32, %s25
        %p251 = scmp.lt.s32.totalorder %s24, 1
        %s252 = scalar_select %p251, %s24, 1
        %p253 = scmp.lt.s32.totalorder %s250, 31
        %s254 = scalar_select %p253, %s250, 31
        %s255 = smul.addr %s252, 64
        %s256 = sadd.s32 %s254, %s255
        %s257 = smul.addr %s256, 4
        %s258 = scalar_lea.vmem %s2, %s257
        %p259 = pneg %p132
        %p260 = pneg %p129
        %s261 = smul.u32 32, %s25
        %p262 = scmp.lt.s32.totalorder %s24, 1
        %s263 = scalar_select %p262, %s24, 1
        %p264 = scmp.lt.s32.totalorder %s261, 31
        %s265 = scalar_select %p264, %s261, 31
        %s266 = smul.addr %s263, 64
        %s267 = sadd.s32 %s265, %s266
        %s268 = smul.addr %s267, 4
        %s269 = scalar_lea.vmem %s3, %s268
        %p270 = pneg %p160
        %p271 = pneg %p157
        %s272 = smul.u32 32, %s25
        %p273 = scmp.lt.s32.totalorder %s24, 1
        %s274 = scalar_select %p273, %s24, 1
        %p275 = scmp.lt.s32.totalorder %s272, 31
        %s276 = scalar_select %p275, %s272, 31
        %s277 = smul.addr %s274, 64
        %s278 = sadd.s32 %s276, %s277
        %s279 = smul.addr %s278, 4
        %s280 = scalar_lea.vmem %s4, %s279
        %s281 = smul.u32 32, %s25
        %s282 = smul.u32 32, %s25
        %p283 = scmp.lt.s32.totalorder %s24, 1
        %s284 = scalar_select %p283, %s24, 1
        %p285 = scmp.lt.s32.totalorder %s282, 31
        %s286 = scalar_select %p285, %s282, 31
        %s287 = smul.addr %s284, 64
        %s288 = sadd.s32 %s286, %s287
        %s289 = smul.addr %s288, 4
        %s290 = scalar_lea.vmem %s2, %s289
        %s291 = smul.u32 32, %s25
        %s292 = smul.u32 32, %s25
        %p293 = scmp.lt.s32.totalorder %s24, 1
        %s294 = scalar_select %p293, %s24, 1
        %p295 = scmp.lt.s32.totalorder %s292, 31
        %s296 = scalar_select %p295, %s292, 31
        %s297 = smul.addr %s294, 64
        %s298 = sadd.s32 %s296, %s297
        %s299 = smul.addr %s298, 4
        %s300 = scalar_lea.vmem %s3, %s299
        %s301 = smul.u32 32, %s25
        %s302 = smul.u32 32, %s25
        %p303 = scmp.lt.s32.totalorder %s24, 1
        %s304 = scalar_select %p303, %s24, 1
        %p305 = scmp.lt.s32.totalorder %s302, 31
        %s306 = scalar_select %p305, %s302, 31
        %s307 = smul.addr %s304, 64
        %s308 = sadd.s32 %s306, %s307
        %s309 = smul.addr %s308, 4
        %s310 = scalar_lea.vmem %s4, %s309
        %s311 = smul.u32 32, %s25
        %v312 = vld [vmem:[%s228] sm:$0xf]
        %v313 = vld [vmem:[%s228 + $0x4] sm:$0xf]
        %v314 = vld [vmem:[%s228 + $0x8] sm:$0xf]
        %v315 = vld [vmem:[%s228 + $0xc] sm:$0xf]
        %v316 = vld [vmem:[%s228 + $0x10] sm:$0xf]
        %v317 = vld [vmem:[%s228 + $0x14] sm:$0xf]
        %v318 = vld [vmem:[%s228 + $0x18] sm:$0xf]
        %v319 = vld [vmem:[%s228 + $0x1c] sm:$0xf]
        %v320 = vld [vmem:[%s228 + $0x20] sm:$0xf]
        %v321 = vld [vmem:[%s228 + $0x24] sm:$0xf]
        %v322 = vld [vmem:[%s228 + $0x28] sm:$0xf]
        %v323 = vld [vmem:[%s228 + $0x2c] sm:$0xf]
        %v324 = vld [vmem:[%s228 + $0x30] sm:$0xf]
        %v325 = vld [vmem:[%s228 + $0x34] sm:$0xf]
        %v326 = vld [vmem:[%s228 + $0x38] sm:$0xf]
        %v327 = vld [vmem:[%s228 + $0x3c] sm:$0xf]
        %v328 = vld [vmem:[%s228 + $0x40] sm:$0xf]
        %v329 = vld [vmem:[%s228 + $0x44] sm:$0xf]
        %v330 = vld [vmem:[%s228 + $0x48] sm:$0xf]
        %v331 = vld [vmem:[%s228 + $0x4c] sm:$0xf]
        %v332 = vld [vmem:[%s228 + $0x50] sm:$0xf]
        %v333 = vld [vmem:[%s228 + $0x54] sm:$0xf]
        %v334 = vld [vmem:[%s228 + $0x58] sm:$0xf]
        %v335 = vld [vmem:[%s228 + $0x5c] sm:$0xf]
        %v336 = vld [vmem:[%s228 + $0x60] sm:$0xf]
        %v337 = vld [vmem:[%s228 + $0x64] sm:$0xf]
        %v338 = vld [vmem:[%s228 + $0x68] sm:$0xf]
        %v339 = vld [vmem:[%s228 + $0x6c] sm:$0xf]
        %v340 = vld [vmem:[%s228 + $0x70] sm:$0xf]
        %v341 = vld [vmem:[%s228 + $0x74] sm:$0xf]
        %v342 = vld [vmem:[%s228 + $0x78] sm:$0xf]
        %v343 = vld [vmem:[%s228 + $0x7c] sm:$0xf]
        %v344 = vld [vmem:[#allocation4] sm:$0xff]
        %v345 = vld [vmem:[#allocation4 + $0x8] sm:$0xf]
        %v346 = vld [vmem:[#allocation4 + $0xc] sm:$0xff]
        %v347 = vld [vmem:[#allocation4 + $0x14] sm:$0xf]
        %v348 = vld [vmem:[#allocation4 + $0x18] sm:$0xff]
        %v349 = vld [vmem:[#allocation4 + $0x20] sm:$0xf]
        %v350 = vld [vmem:[#allocation4 + $0x24] sm:$0xff]
        %v351 = vld [vmem:[#allocation4 + $0x2c] sm:$0xf]
        %v352 = vld [vmem:[#allocation4 + $0x30] sm:$0xff]
        %v353 = vld [vmem:[#allocation4 + $0x38] sm:$0xf]
        %v354 = vld [vmem:[#allocation4 + $0x3c] sm:$0xff]
        %v355 = vld [vmem:[#allocation4 + $0x44] sm:$0xf]
        %v356 = vld [vmem:[#allocation4 + $0x48] sm:$0xff]
        %v357 = vld [vmem:[#allocation4 + $0x50] sm:$0xf]
        %v358 = vld [vmem:[#allocation4 + $0x54] sm:$0xff]
        %v359 = vld [vmem:[#allocation4 + $0x5c] sm:$0xf]
        %v360 = vld [vmem:[#allocation4 + $0x60] sm:$0xff]
        %v361 = vld [vmem:[#allocation4 + $0x68] sm:$0xf]
        %v362 = vld [vmem:[#allocation4 + $0x6c] sm:$0xff]
        %v363 = vld [vmem:[#allocation4 + $0x74] sm:$0xf]
        %v364 = vld [vmem:[#allocation4 + $0x78] sm:$0xff]
        %v365 = vld [vmem:[#allocation4 + $0x80] sm:$0xf]
        %v366 = vld [vmem:[#allocation4 + $0x84] sm:$0xff]
        %v367 = vld [vmem:[#allocation4 + $0x8c] sm:$0xf]
        %v368 = vld [vmem:[#allocation4 + $0x90] sm:$0xff]
        %v369 = vld [vmem:[#allocation4 + $0x98] sm:$0xf]
        %v370 = vld [vmem:[#allocation4 + $0x9c] sm:$0xff]
        %v371 = vld [vmem:[#allocation4 + $0xa4] sm:$0xf]
        %v372 = vld [vmem:[#allocation4 + $0xa8] sm:$0xff]
        %v373 = vld [vmem:[#allocation4 + $0xb0] sm:$0xf]
        %v374 = vld [vmem:[#allocation4 + $0xb4] sm:$0xff]
        %v375 = vld [vmem:[#allocation4 + $0xbc] sm:$0xf]
        %v408 = vunpack.c.l.b16 %v312
        %v409 = vunpack.c.l.b16 %v313
        %v410 = vunpack.c.l.b16 %v314
        %v411 = vunpack.c.l.b16 %v315
        %v412 = vunpack.c.l.b16 %v316
        %v413 = vunpack.c.l.b16 %v317
        %v414 = vunpack.c.l.b16 %v318
        %v415 = vunpack.c.l.b16 %v319
        %v416 = vunpack.c.l.b16 %v320
        %v417 = vunpack.c.l.b16 %v321
        %v418 = vunpack.c.l.b16 %v322
        %v419 = vunpack.c.l.b16 %v323
        %v420 = vunpack.c.l.b16 %v324
        %v421 = vunpack.c.l.b16 %v325
        %v422 = vunpack.c.l.b16 %v326
        %v423 = vunpack.c.l.b16 %v327
        %v424 = vunpack.c.l.b16 %v328
        %v425 = vunpack.c.l.b16 %v329
        %v426 = vunpack.c.l.b16 %v330
        %v427 = vunpack.c.l.b16 %v331
        %v428 = vunpack.c.l.b16 %v332
        %v429 = vunpack.c.l.b16 %v333
        %v430 = vunpack.c.l.b16 %v334
        %v431 = vunpack.c.l.b16 %v335
        %v432 = vunpack.c.l.b16 %v336
        %v433 = vunpack.c.l.b16 %v337
        %v434 = vunpack.c.l.b16 %v338
        %v435 = vunpack.c.l.b16 %v339
        %v436 = vunpack.c.l.b16 %v340
        %v437 = vunpack.c.l.b16 %v341
        %v438 = vunpack.c.l.b16 %v342
        %v439 = vunpack.c.l.b16 %v343
        %v440 = vpack.c.b16 %v409, %v408
        %v441 = vpack.c.b16 %v411, %v410
        %v442 = vpack.c.b16 %v413, %v412
        %v443 = vpack.c.b16 %v415, %v414
        %v444 = vpack.c.b16 %v417, %v416
        %v445 = vpack.c.b16 %v419, %v418
        %v446 = vpack.c.b16 %v421, %v420
        %v447 = vpack.c.b16 %v423, %v422
        %v448 = vpack.c.b16 %v425, %v424
        %v449 = vpack.c.b16 %v427, %v426
        %v450 = vpack.c.b16 %v429, %v428
        %v451 = vpack.c.b16 %v431, %v430
        %v452 = vpack.c.b16 %v433, %v432
        %v453 = vpack.c.b16 %v435, %v434
        %v454 = vpack.c.b16 %v437, %v436
        %v455 = vpack.c.b16 %v439, %v438
        %v504 = vunpack.c.l.b16 %v344
        %v505 = vunpack.c.h.b16 %v344
        %v506 = vunpack.c.l.b16 %v345
        %v507 = vunpack.c.l.b16 %v346
        %v508 = vunpack.c.h.b16 %v346
        %v509 = vunpack.c.l.b16 %v347
        %v510 = vunpack.c.l.b16 %v348
        %v511 = vunpack.c.h.b16 %v348
        %v512 = vunpack.c.l.b16 %v349
        %v513 = vunpack.c.l.b16 %v350
        %v514 = vunpack.c.h.b16 %v350
        %v515 = vunpack.c.l.b16 %v351
        %v516 = vunpack.c.l.b16 %v352
        %v517 = vunpack.c.h.b16 %v352
        %v518 = vunpack.c.l.b16 %v353
        %v519 = vunpack.c.l.b16 %v354
        %v520 = vunpack.c.h.b16 %v354
        %v521 = vunpack.c.l.b16 %v355
        %v522 = vunpack.c.l.b16 %v356
        %v523 = vunpack.c.h.b16 %v356
        %v524 = vunpack.c.l.b16 %v357
        %v525 = vunpack.c.l.b16 %v358
        %v526 = vunpack.c.h.b16 %v358
        %v527 = vunpack.c.l.b16 %v359
        %v528 = vunpack.c.l.b16 %v360
        %v529 = vunpack.c.h.b16 %v360
        %v530 = vunpack.c.l.b16 %v361
        %v531 = vunpack.c.l.b16 %v362
        %v532 = vunpack.c.h.b16 %v362
        %v533 = vunpack.c.l.b16 %v363
        %v534 = vunpack.c.l.b16 %v364
        %v535 = vunpack.c.h.b16 %v364
        %v536 = vunpack.c.l.b16 %v365
        %v537 = vunpack.c.l.b16 %v366
        %v538 = vunpack.c.h.b16 %v366
        %v539 = vunpack.c.l.b16 %v367
        %v540 = vunpack.c.l.b16 %v368
        %v541 = vunpack.c.h.b16 %v368
        %v542 = vunpack.c.l.b16 %v369
        %v543 = vunpack.c.l.b16 %v370
        %v544 = vunpack.c.h.b16 %v370
        %v545 = vunpack.c.l.b16 %v371
        %v546 = vunpack.c.l.b16 %v372
        %v547 = vunpack.c.h.b16 %v372
        %v548 = vunpack.c.l.b16 %v373
        %v549 = vunpack.c.l.b16 %v374
        %v550 = vunpack.c.h.b16 %v374
        %v551 = vunpack.c.l.b16 %v375
        %v552 = vpack.c.b16 %v507, %v504
        %v553 = vpack.c.b16 %v508, %v505
        %v554 = vpack.c.b16 %v509, %v506
        %v555 = vpack.c.b16 %v513, %v510
        %v556 = vpack.c.b16 %v514, %v511
        %v557 = vpack.c.b16 %v515, %v512
        %v558 = vpack.c.b16 %v519, %v516
        %v559 = vpack.c.b16 %v520, %v517
        %v560 = vpack.c.b16 %v521, %v518
        %v561 = vpack.c.b16 %v525, %v522
        %v562 = vpack.c.b16 %v526, %v523
        %v563 = vpack.c.b16 %v527, %v524
        %v564 = vpack.c.b16 %v531, %v528
        %v565 = vpack.c.b16 %v532, %v529
        %v566 = vpack.c.b16 %v533, %v530
        %v567 = vpack.c.b16 %v537, %v534
        %v568 = vpack.c.b16 %v538, %v535
        %v569 = vpack.c.b16 %v539, %v536
        %v570 = vpack.c.b16 %v543, %v540
        %v571 = vpack.c.b16 %v544, %v541
        %v572 = vpack.c.b16 %v545, %v542
        %v573 = vpack.c.b16 %v549, %v546
        %v574 = vpack.c.b16 %v550, %v547
        %v575 = vpack.c.b16 %v551, %v548
        %600 = vmatpush.bf16.msra.mxu0 %v573
        %601 = vmatpush.bf16.msra.mxu0 %v570
        %602 = vmatpush.bf16.msra.mxu0 %v567
        %603 = vmatpush.bf16.msra.mxu0 %v564
        %604 = vmatpush.bf16.msra.mxu0 %v561
        %605 = vmatpush.bf16.msra.mxu0 %v558
        %606 = vmatpush.bf16.msra.mxu0 %v555
        %607 = vmatpush.bf16.msra.mxu0 %v552
        %608 = vmatmul.bf16.gmra.mxu0 %v440
        %v609 = vpop.f32.mrf.mxu0
        %v610 = vadd.f32 0.0, %v609
        %v611 = vpop.f32.mrf.mxu0
        %v612 = vadd.f32 0.0, %v611
        %613 = vmatmul.bf16.gmra.mxu0 %v441
        %v614 = vpop.f32.mrf.mxu0
        %v615 = vadd.f32 0.0, %v614
        %v616 = vpop.f32.mrf.mxu0
        %v617 = vadd.f32 0.0, %v616
        %618 = vmatmul.bf16.gmra.mxu0 %v442
        %v619 = vpop.f32.mrf.mxu0
        %v620 = vadd.f32 0.0, %v619
        %v621 = vpop.f32.mrf.mxu0
        %v622 = vadd.f32 0.0, %v621
        %623 = vmatmul.bf16.gmra.mxu0 %v443
        %v624 = vpop.f32.mrf.mxu0
        %v625 = vadd.f32 0.0, %v624
        %v626 = vpop.f32.mrf.mxu0
        %v627 = vadd.f32 0.0, %v626
        %628 = vmatmul.bf16.gmra.mxu0 %v444
        %v629 = vpop.f32.mrf.mxu0
        %v630 = vadd.f32 0.0, %v629
        %v631 = vpop.f32.mrf.mxu0
        %v632 = vadd.f32 0.0, %v631
        %633 = vmatmul.bf16.gmra.mxu0 %v445
        %v634 = vpop.f32.mrf.mxu0
        %v635 = vadd.f32 0.0, %v634
        %v636 = vpop.f32.mrf.mxu0
        %v637 = vadd.f32 0.0, %v636
        %638 = vmatmul.bf16.gmra.mxu0 %v446
        %v639 = vpop.f32.mrf.mxu0
        %v640 = vadd.f32 0.0, %v639
        %v641 = vpop.f32.mrf.mxu0
        %v642 = vadd.f32 0.0, %v641
        %643 = vmatmul.bf16.gmra.mxu0 %v447
        %v644 = vpop.f32.mrf.mxu0
        %v645 = vadd.f32 0.0, %v644
        %v646 = vpop.f32.mrf.mxu0
        %v647 = vadd.f32 0.0, %v646
        %648 = vmatmul.bf16.gmra.mxu0 %v448
        %v649 = vpop.f32.mrf.mxu0
        %v650 = vadd.f32 0.0, %v649
        %v651 = vpop.f32.mrf.mxu0
        %v652 = vadd.f32 0.0, %v651
        %653 = vmatmul.bf16.gmra.mxu0 %v449
        %v654 = vpop.f32.mrf.mxu0
        %v655 = vadd.f32 0.0, %v654
        %v656 = vpop.f32.mrf.mxu0
        %v657 = vadd.f32 0.0, %v656
        %658 = vmatmul.bf16.gmra.mxu0 %v450
        %v659 = vpop.f32.mrf.mxu0
        %v660 = vadd.f32 0.0, %v659
        %v661 = vpop.f32.mrf.mxu0
        %v662 = vadd.f32 0.0, %v661
        %663 = vmatmul.bf16.gmra.mxu0 %v451
        %v664 = vpop.f32.mrf.mxu0
        %v665 = vadd.f32 0.0, %v664
        %v666 = vpop.f32.mrf.mxu0
        %v667 = vadd.f32 0.0, %v666
        %668 = vmatmul.bf16.gmra.mxu0 %v452
        %v669 = vpop.f32.mrf.mxu0
        %v670 = vadd.f32 0.0, %v669
        %v671 = vpop.f32.mrf.mxu0
        %v672 = vadd.f32 0.0, %v671
        %673 = vmatmul.bf16.gmra.mxu0 %v453
        %v674 = vpop.f32.mrf.mxu0
        %v675 = vadd.f32 0.0, %v674
        %v676 = vpop.f32.mrf.mxu0
        %v677 = vadd.f32 0.0, %v676
        %678 = vmatmul.bf16.gmra.mxu0 %v454
        %v679 = vpop.f32.mrf.mxu0
        %v680 = vadd.f32 0.0, %v679
        %v681 = vpop.f32.mrf.mxu0
        %v682 = vadd.f32 0.0, %v681
        %683 = vmatmul.bf16.gmra.mxu0 %v455
        %v684 = vpop.f32.mrf.mxu0
        %v685 = vadd.f32 0.0, %v684
        %v686 = vpop.f32.mrf.mxu0
        %v687 = vadd.f32 0.0, %v686
        %688 = vdwg.mxu0
        %689 = vmatpush.bf16.msra.mxu0 %v574
        %690 = vmatpush.bf16.msra.mxu0 %v571
        %691 = vmatpush.bf16.msra.mxu0 %v568
        %692 = vmatpush.bf16.msra.mxu0 %v565
        %693 = vmatpush.bf16.msra.mxu0 %v562
        %694 = vmatpush.bf16.msra.mxu0 %v559
        %695 = vmatpush.bf16.msra.mxu0 %v556
        %696 = vmatpush.bf16.msra.mxu0 %v553
        %697 = vmatmul.bf16.gmra.mxu0 %v440
        %v698 = vpop.f32.mrf.mxu0
        %v699 = vadd.f32 0.0, %v698
        %v700 = vpop.f32.mrf.mxu0
        %v701 = vadd.f32 0.0, %v700
        %702 = vmatmul.bf16.gmra.mxu0 %v441
        %v703 = vpop.f32.mrf.mxu0
        %v704 = vadd.f32 0.0, %v703
        %v705 = vpop.f32.mrf.mxu0
        %v706 = vadd.f32 0.0, %v705
        %707 = vmatmul.bf16.gmra.mxu0 %v442
        %v708 = vpop.f32.mrf.mxu0
        %v709 = vadd.f32 0.0, %v708
        %v710 = vpop.f32.mrf.mxu0
        %v711 = vadd.f32 0.0, %v710
        %712 = vmatmul.bf16.gmra.mxu0 %v443
        %v713 = vpop.f32.mrf.mxu0
        %v714 = vadd.f32 0.0, %v713
        %v715 = vpop.f32.mrf.mxu0
        %v716 = vadd.f32 0.0, %v715
        %717 = vmatmul.bf16.gmra.mxu0 %v444
        %v718 = vpop.f32.mrf.mxu0
        %v719 = vadd.f32 0.0, %v718
        %v720 = vpop.f32.mrf.mxu0
        %v721 = vadd.f32 0.0, %v720
        %722 = vmatmul.bf16.gmra.mxu0 %v445
        %v723 = vpop.f32.mrf.mxu0
        %v724 = vadd.f32 0.0, %v723
        %v725 = vpop.f32.mrf.mxu0
        %v726 = vadd.f32 0.0, %v725
        %727 = vmatmul.bf16.gmra.mxu0 %v446
        %v728 = vpop.f32.mrf.mxu0
        %v729 = vadd.f32 0.0, %v728
        %v730 = vpop.f32.mrf.mxu0
        %v731 = vadd.f32 0.0, %v730
        %732 = vmatmul.bf16.gmra.mxu0 %v447
        %v733 = vpop.f32.mrf.mxu0
        %v734 = vadd.f32 0.0, %v733
        %v735 = vpop.f32.mrf.mxu0
        %v736 = vadd.f32 0.0, %v735
        %737 = vmatmul.bf16.gmra.mxu0 %v448
        %v738 = vpop.f32.mrf.mxu0
        %v739 = vadd.f32 0.0, %v738
        %v740 = vpop.f32.mrf.mxu0
        %v741 = vadd.f32 0.0, %v740
        %742 = vmatmul.bf16.gmra.mxu0 %v449
        %v743 = vpop.f32.mrf.mxu0
        %v744 = vadd.f32 0.0, %v743
        %v745 = vpop.f32.mrf.mxu0
        %v746 = vadd.f32 0.0, %v745
        %747 = vmatmul.bf16.gmra.mxu0 %v450
        %v748 = vpop.f32.mrf.mxu0
        %v749 = vadd.f32 0.0, %v748
        %v750 = vpop.f32.mrf.mxu0
        %v751 = vadd.f32 0.0, %v750
        %752 = vmatmul.bf16.gmra.mxu0 %v451
        %v753 = vpop.f32.mrf.mxu0
        %v754 = vadd.f32 0.0, %v753
        %v755 = vpop.f32.mrf.mxu0
        %v756 = vadd.f32 0.0, %v755
        %757 = vmatmul.bf16.gmra.mxu0 %v452
        %v758 = vpop.f32.mrf.mxu0
        %v759 = vadd.f32 0.0, %v758
        %v760 = vpop.f32.mrf.mxu0
        %v761 = vadd.f32 0.0, %v760
        %762 = vmatmul.bf16.gmra.mxu0 %v453
        %v763 = vpop.f32.mrf.mxu0
        %v764 = vadd.f32 0.0, %v763
        %v765 = vpop.f32.mrf.mxu0
        %v766 = vadd.f32 0.0, %v765
        %767 = vmatmul.bf16.gmra.mxu0 %v454
        %v768 = vpop.f32.mrf.mxu0
        %v769 = vadd.f32 0.0, %v768
        %v770 = vpop.f32.mrf.mxu0
        %v771 = vadd.f32 0.0, %v770
        %772 = vmatmul.bf16.gmra.mxu0 %v455
        %v773 = vpop.f32.mrf.mxu0
        %v774 = vadd.f32 0.0, %v773
        %v775 = vpop.f32.mrf.mxu0
        %v776 = vadd.f32 0.0, %v775
        %777 = vdwg.mxu0
        %778 = vmatpush.bf16.msra.mxu0 %v575
        %779 = vmatpush.bf16.msra.mxu0 %v572
        %780 = vmatpush.bf16.msra.mxu0 %v569
        %781 = vmatpush.bf16.msra.mxu0 %v566
        %782 = vmatpush.bf16.msra.mxu0 %v563
        %783 = vmatpush.bf16.msra.mxu0 %v560
        %784 = vmatpush.bf16.msra.mxu0 %v557
        %785 = vmatpush.bf16.msra.mxu0 %v554
        %786 = vmatmul.bf16.gmra.mxu0 %v440
        %v787 = vpop.f32.mrf.mxu0
        %v788 = vadd.f32 0.0, %v787
        %v789 = vpop.f32.mrf.mxu0
        %v790 = vadd.f32 0.0, %v789
        %791 = vmatmul.bf16.gmra.mxu0 %v441
        %v792 = vpop.f32.mrf.mxu0
        %v793 = vadd.f32 0.0, %v792
        %v794 = vpop.f32.mrf.mxu0
        %v795 = vadd.f32 0.0, %v794
        %796 = vmatmul.bf16.gmra.mxu0 %v442
        %v797 = vpop.f32.mrf.mxu0
        %v798 = vadd.f32 0.0, %v797
        %v799 = vpop.f32.mrf.mxu0
        %v800 = vadd.f32 0.0, %v799
        %801 = vmatmul.bf16.gmra.mxu0 %v443
        %v802 = vpop.f32.mrf.mxu0
        %v803 = vadd.f32 0.0, %v802
        %v804 = vpop.f32.mrf.mxu0
        %v805 = vadd.f32 0.0, %v804
        %806 = vmatmul.bf16.gmra.mxu0 %v444
        %v807 = vpop.f32.mrf.mxu0
        %v808 = vadd.f32 0.0, %v807
        %v809 = vpop.f32.mrf.mxu0
        %v810 = vadd.f32 0.0, %v809
        %811 = vmatmul.bf16.gmra.mxu0 %v445
        %v812 = vpop.f32.mrf.mxu0
        %v813 = vadd.f32 0.0, %v812
        %v814 = vpop.f32.mrf.mxu0
        %v815 = vadd.f32 0.0, %v814
        %816 = vmatmul.bf16.gmra.mxu0 %v446
        %v817 = vpop.f32.mrf.mxu0
        %v818 = vadd.f32 0.0, %v817
        %v819 = vpop.f32.mrf.mxu0
        %v820 = vadd.f32 0.0, %v819
        %821 = vmatmul.bf16.gmra.mxu0 %v447
        %v822 = vpop.f32.mrf.mxu0
        %v823 = vadd.f32 0.0, %v822
        %v824 = vpop.f32.mrf.mxu0
        %v825 = vadd.f32 0.0, %v824
        %826 = vmatmul.bf16.gmra.mxu0 %v448
        %v827 = vpop.f32.mrf.mxu0
        %v828 = vadd.f32 0.0, %v827
        %v829 = vpop.f32.mrf.mxu0
        %v830 = vadd.f32 0.0, %v829
        %831 = vmatmul.bf16.gmra.mxu0 %v449
        %v832 = vpop.f32.mrf.mxu0
        %v833 = vadd.f32 0.0, %v832
        %v834 = vpop.f32.mrf.mxu0
        %v835 = vadd.f32 0.0, %v834
        %836 = vmatmul.bf16.gmra.mxu0 %v450
        %v837 = vpop.f32.mrf.mxu0
        %v838 = vadd.f32 0.0, %v837
        %v839 = vpop.f32.mrf.mxu0
        %v840 = vadd.f32 0.0, %v839
        %841 = vmatmul.bf16.gmra.mxu0 %v451
        %v842 = vpop.f32.mrf.mxu0
        %v843 = vadd.f32 0.0, %v842
        %v844 = vpop.f32.mrf.mxu0
        %v845 = vadd.f32 0.0, %v844
        %846 = vmatmul.bf16.gmra.mxu0 %v452
        %v847 = vpop.f32.mrf.mxu0
        %v848 = vadd.f32 0.0, %v847
        %v849 = vpop.f32.mrf.mxu0
        %v850 = vadd.f32 0.0, %v849
        %851 = vmatmul.bf16.gmra.mxu0 %v453
        %v852 = vpop.f32.mrf.mxu0
        %v853 = vadd.f32 0.0, %v852
        %v854 = vpop.f32.mrf.mxu0
        %v855 = vadd.f32 0.0, %v854
        %856 = vmatmul.bf16.gmra.mxu0 %v454
        %v857 = vpop.f32.mrf.mxu0
        %v858 = vadd.f32 0.0, %v857
        %v859 = vpop.f32.mrf.mxu0
        %v860 = vadd.f32 0.0, %v859
        %861 = vmatmul.bf16.gmra.mxu0 %v455
        %v862 = vpop.f32.mrf.mxu0
        %v863 = vadd.f32 0.0, %v862
        %v864 = vpop.f32.mrf.mxu0
        %v865 = vadd.f32 0.0, %v864
        %866 = vdwg.mxu0
        %v867 = vmul.f32 %v610, 0.18033688
        %v868 = vmul.f32 %v612, 0.18033688
        %v869 = vmul.f32 %v615, 0.18033688
        %v870 = vmul.f32 %v617, 0.18033688
        %v871 = vmul.f32 %v620, 0.18033688
        %v872 = vmul.f32 %v622, 0.18033688
        %v873 = vmul.f32 %v625, 0.18033688
        %v874 = vmul.f32 %v627, 0.18033688
        %v875 = vmul.f32 %v630, 0.18033688
        %v876 = vmul.f32 %v632, 0.18033688
        %v877 = vmul.f32 %v635, 0.18033688
        %v878 = vmul.f32 %v637, 0.18033688
        %v879 = vmul.f32 %v640, 0.18033688
        %v880 = vmul.f32 %v642, 0.18033688
        %v881 = vmul.f32 %v645, 0.18033688
        %v882 = vmul.f32 %v647, 0.18033688
        %v883 = vmul.f32 %v650, 0.18033688
        %v884 = vmul.f32 %v652, 0.18033688
        %v885 = vmul.f32 %v655, 0.18033688
        %v886 = vmul.f32 %v657, 0.18033688
        %v887 = vmul.f32 %v660, 0.18033688
        %v888 = vmul.f32 %v662, 0.18033688
        %v889 = vmul.f32 %v665, 0.18033688
        %v890 = vmul.f32 %v667, 0.18033688
        %v891 = vmul.f32 %v670, 0.18033688
        %v892 = vmul.f32 %v672, 0.18033688
        %v893 = vmul.f32 %v675, 0.18033688
        %v894 = vmul.f32 %v677, 0.18033688
        %v895 = vmul.f32 %v680, 0.18033688
        %v896 = vmul.f32 %v682, 0.18033688
        %v897 = vmul.f32 %v685, 0.18033688
        %v898 = vmul.f32 %v687, 0.18033688
        %v899 = vpack.c.bf16 %v867, %v867
        %v900 = vpack.c.bf16 %v868, %v868
        %v901 = vpack.c.bf16 %v869, %v869
        %v902 = vpack.c.bf16 %v870, %v870
        %v903 = vpack.c.bf16 %v871, %v871
        %v904 = vpack.c.bf16 %v872, %v872
        %v905 = vpack.c.bf16 %v873, %v873
        %v906 = vpack.c.bf16 %v874, %v874
        %v907 = vpack.c.bf16 %v875, %v875
        %v908 = vpack.c.bf16 %v876, %v876
        %v909 = vpack.c.bf16 %v877, %v877
        %v910 = vpack.c.bf16 %v878, %v878
        %v911 = vpack.c.bf16 %v879, %v879
        %v912 = vpack.c.bf16 %v880, %v880
        %v913 = vpack.c.bf16 %v881, %v881
        %v914 = vpack.c.bf16 %v882, %v882
        %v915 = vpack.c.bf16 %v883, %v883
        %v916 = vpack.c.bf16 %v884, %v884
        %v917 = vpack.c.bf16 %v885, %v885
        %v918 = vpack.c.bf16 %v886, %v886
        %v919 = vpack.c.bf16 %v887, %v887
        %v920 = vpack.c.bf16 %v888, %v888
        %v921 = vpack.c.bf16 %v889, %v889
        %v922 = vpack.c.bf16 %v890, %v890
        %v923 = vpack.c.bf16 %v891, %v891
        %v924 = vpack.c.bf16 %v892, %v892
        %v925 = vpack.c.bf16 %v893, %v893
        %v926 = vpack.c.bf16 %v894, %v894
        %v927 = vpack.c.bf16 %v895, %v895
        %v928 = vpack.c.bf16 %v896, %v896
        %v929 = vpack.c.bf16 %v897, %v897
        %v930 = vpack.c.bf16 %v898, %v898
        %vm931 = vcmask 519168
        %932 = vst.msk [vmem:[%s290] sm:$0xf] %vm931, %v899
        %933 = vst.msk [vmem:[%s290 + $0x4] sm:$0xf] %vm931, %v900
        %934 = vst.msk [vmem:[%s290 + $0x8] sm:$0xf] %vm931, %v901
        %935 = vst.msk [vmem:[%s290 + $0xc] sm:$0xf] %vm931, %v902
        %936 = vst.msk [vmem:[%s290 + $0x10] sm:$0xf] %vm931, %v903
        %937 = vst.msk [vmem:[%s290 + $0x14] sm:$0xf] %vm931, %v904
        %938 = vst.msk [vmem:[%s290 + $0x18] sm:$0xf] %vm931, %v905
        %939 = vst.msk [vmem:[%s290 + $0x1c] sm:$0xf] %vm931, %v906
        %940 = vst.msk [vmem:[%s290 + $0x20] sm:$0xf] %vm931, %v907
        %941 = vst.msk [vmem:[%s290 + $0x24] sm:$0xf] %vm931, %v908
        %942 = vst.msk [vmem:[%s290 + $0x28] sm:$0xf] %vm931, %v909
        %943 = vst.msk [vmem:[%s290 + $0x2c] sm:$0xf] %vm931, %v910
        %944 = vst.msk [vmem:[%s290 + $0x30] sm:$0xf] %vm931, %v911
        %945 = vst.msk [vmem:[%s290 + $0x34] sm:$0xf] %vm931, %v912
        %946 = vst.msk [vmem:[%s290 + $0x38] sm:$0xf] %vm931, %v913
        %947 = vst.msk [vmem:[%s290 + $0x3c] sm:$0xf] %vm931, %v914
        %948 = vst.msk [vmem:[%s290 + $0x40] sm:$0xf] %vm931, %v915
        %949 = vst.msk [vmem:[%s290 + $0x44] sm:$0xf] %vm931, %v916
        %950 = vst.msk [vmem:[%s290 + $0x48] sm:$0xf] %vm931, %v917
        %951 = vst.msk [vmem:[%s290 + $0x4c] sm:$0xf] %vm931, %v918
        %952 = vst.msk [vmem:[%s290 + $0x50] sm:$0xf] %vm931, %v919
        %953 = vst.msk [vmem:[%s290 + $0x54] sm:$0xf] %vm931, %v920
        %954 = vst.msk [vmem:[%s290 + $0x58] sm:$0xf] %vm931, %v921
        %955 = vst.msk [vmem:[%s290 + $0x5c] sm:$0xf] %vm931, %v922
        %956 = vst.msk [vmem:[%s290 + $0x60] sm:$0xf] %vm931, %v923
        %957 = vst.msk [vmem:[%s290 + $0x64] sm:$0xf] %vm931, %v924
        %958 = vst.msk [vmem:[%s290 + $0x68] sm:$0xf] %vm931, %v925
        %959 = vst.msk [vmem:[%s290 + $0x6c] sm:$0xf] %vm931, %v926
        %960 = vst.msk [vmem:[%s290 + $0x70] sm:$0xf] %vm931, %v927
        %961 = vst.msk [vmem:[%s290 + $0x74] sm:$0xf] %vm931, %v928
        %962 = vst.msk [vmem:[%s290 + $0x78] sm:$0xf] %vm931, %v929
        %963 = vst.msk [vmem:[%s290 + $0x7c] sm:$0xf] %vm931, %v930
        %v964 = vpack.c.bf16 %v699, %v699
        %v965 = vpack.c.bf16 %v701, %v701
        %v966 = vpack.c.bf16 %v704, %v704
        %v967 = vpack.c.bf16 %v706, %v706
        %v968 = vpack.c.bf16 %v709, %v709
        %v969 = vpack.c.bf16 %v711, %v711
        %v970 = vpack.c.bf16 %v714, %v714
        %v971 = vpack.c.bf16 %v716, %v716
        %v972 = vpack.c.bf16 %v719, %v719
        %v973 = vpack.c.bf16 %v721, %v721
        %v974 = vpack.c.bf16 %v724, %v724
        %v975 = vpack.c.bf16 %v726, %v726
        %v976 = vpack.c.bf16 %v729, %v729
        %v977 = vpack.c.bf16 %v731, %v731
        %v978 = vpack.c.bf16 %v734, %v734
        %v979 = vpack.c.bf16 %v736, %v736
        %v980 = vpack.c.bf16 %v739, %v739
        %v981 = vpack.c.bf16 %v741, %v741
        %v982 = vpack.c.bf16 %v744, %v744
        %v983 = vpack.c.bf16 %v746, %v746
        %v984 = vpack.c.bf16 %v749, %v749
        %v985 = vpack.c.bf16 %v751, %v751
        %v986 = vpack.c.bf16 %v754, %v754
        %v987 = vpack.c.bf16 %v756, %v756
        %v988 = vpack.c.bf16 %v759, %v759
        %v989 = vpack.c.bf16 %v761, %v761
        %v990 = vpack.c.bf16 %v764, %v764
        %v991 = vpack.c.bf16 %v766, %v766
        %v992 = vpack.c.bf16 %v769, %v769
        %v993 = vpack.c.bf16 %v771, %v771
        %v994 = vpack.c.bf16 %v774, %v774
        %v995 = vpack.c.bf16 %v776, %v776
        %996 = vst.msk [vmem:[%s300] sm:$0xf] %vm931, %v964
        %997 = vst.msk [vmem:[%s300 + $0x4] sm:$0xf] %vm931, %v965
        %998 = vst.msk [vmem:[%s300 + $0x8] sm:$0xf] %vm931, %v966
        %999 = vst.msk [vmem:[%s300 + $0xc] sm:$0xf] %vm931, %v967
        %1000 = vst.msk [vmem:[%s300 + $0x10] sm:$0xf] %vm931, %v968
        %1001 = vst.msk [vmem:[%s300 + $0x14] sm:$0xf] %vm931, %v969
        %1002 = vst.msk [vmem:[%s300 + $0x18] sm:$0xf] %vm931, %v970
        %1003 = vst.msk [vmem:[%s300 + $0x1c] sm:$0xf] %vm931, %v971
        %1004 = vst.msk [vmem:[%s300 + $0x20] sm:$0xf] %vm931, %v972
        %1005 = vst.msk [vmem:[%s300 + $0x24] sm:$0xf] %vm931, %v973
        %1006 = vst.msk [vmem:[%s300 + $0x28] sm:$0xf] %vm931, %v974
        %1007 = vst.msk [vmem:[%s300 + $0x2c] sm:$0xf] %vm931, %v975
        %1008 = vst.msk [vmem:[%s300 + $0x30] sm:$0xf] %vm931, %v976
        %1009 = vst.msk [vmem:[%s300 + $0x34] sm:$0xf] %vm931, %v977
        %1010 = vst.msk [vmem:[%s300 + $0x38] sm:$0xf] %vm931, %v978
        %1011 = vst.msk [vmem:[%s300 + $0x3c] sm:$0xf] %vm931, %v979
        %1012 = vst.msk [vmem:[%s300 + $0x40] sm:$0xf] %vm931, %v980
        %1013 = vst.msk [vmem:[%s300 + $0x44] sm:$0xf] %vm931, %v981
        %1014 = vst.msk [vmem:[%s300 + $0x48] sm:$0xf] %vm931, %v982
        %1015 = vst.msk [vmem:[%s300 + $0x4c] sm:$0xf] %vm931, %v983
        %1016 = vst.msk [vmem:[%s300 + $0x50] sm:$0xf] %vm931, %v984
        %1017 = vst.msk [vmem:[%s300 + $0x54] sm:$0xf] %vm931, %v985
        %1018 = vst.msk [vmem:[%s300 + $0x58] sm:$0xf] %vm931, %v986
        %1019 = vst.msk [vmem:[%s300 + $0x5c] sm:$0xf] %vm931, %v987
        %1020 = vst.msk [vmem:[%s300 + $0x60] sm:$0xf] %vm931, %v988
        %1021 = vst.msk [vmem:[%s300 + $0x64] sm:$0xf] %vm931, %v989
        %1022 = vst.msk [vmem:[%s300 + $0x68] sm:$0xf] %vm931, %v990
        %1023 = vst.msk [vmem:[%s300 + $0x6c] sm:$0xf] %vm931, %v991
        %1024 = vst.msk [vmem:[%s300 + $0x70] sm:$0xf] %vm931, %v992
        %1025 = vst.msk [vmem:[%s300 + $0x74] sm:$0xf] %vm931, %v993
        %1026 = vst.msk [vmem:[%s300 + $0x78] sm:$0xf] %vm931, %v994
        %1027 = vst.msk [vmem:[%s300 + $0x7c] sm:$0xf] %vm931, %v995
        %v1028 = vpack.c.bf16 %v788, %v788
        %v1029 = vpack.c.bf16 %v790, %v790
        %v1030 = vpack.c.bf16 %v793, %v793
        %v1031 = vpack.c.bf16 %v795, %v795
        %v1032 = vpack.c.bf16 %v798, %v798
        %v1033 = vpack.c.bf16 %v800, %v800
        %v1034 = vpack.c.bf16 %v803, %v803
        %v1035 = vpack.c.bf16 %v805, %v805
        %v1036 = vpack.c.bf16 %v808, %v808
        %v1037 = vpack.c.bf16 %v810, %v810
        %v1038 = vpack.c.bf16 %v813, %v813
        %v1039 = vpack.c.bf16 %v815, %v815
        %v1040 = vpack.c.bf16 %v818, %v818
        %v1041 = vpack.c.bf16 %v820, %v820
        %v1042 = vpack.c.bf16 %v823, %v823
        %v1043 = vpack.c.bf16 %v825, %v825
        %v1044 = vpack.c.bf16 %v828, %v828
        %v1045 = vpack.c.bf16 %v830, %v830
        %v1046 = vpack.c.bf16 %v833, %v833
        %v1047 = vpack.c.bf16 %v835, %v835
        %v1048 = vpack.c.bf16 %v838, %v838
        %v1049 = vpack.c.bf16 %v840, %v840
        %v1050 = vpack.c.bf16 %v843, %v843
        %v1051 = vpack.c.bf16 %v845, %v845
        %v1052 = vpack.c.bf16 %v848, %v848
        %v1053 = vpack.c.bf16 %v850, %v850
        %v1054 = vpack.c.bf16 %v853, %v853
        %v1055 = vpack.c.bf16 %v855, %v855
        %v1056 = vpack.c.bf16 %v858, %v858
        %v1057 = vpack.c.bf16 %v860, %v860
        %v1058 = vpack.c.bf16 %v863, %v863
        %v1059 = vpack.c.bf16 %v865, %v865
        %1060 = vst.msk [vmem:[%s310] sm:$0xf] %vm931, %v1028
        %1061 = vst.msk [vmem:[%s310 + $0x4] sm:$0xf] %vm931, %v1029
        %1062 = vst.msk [vmem:[%s310 + $0x8] sm:$0xf] %vm931, %v1030
        %1063 = vst.msk [vmem:[%s310 + $0xc] sm:$0xf] %vm931, %v1031
        %1064 = vst.msk [vmem:[%s310 + $0x10] sm:$0xf] %vm931, %v1032
        %1065 = vst.msk [vmem:[%s310 + $0x14] sm:$0xf] %vm931, %v1033
        %1066 = vst.msk [vmem:[%s310 + $0x18] sm:$0xf] %vm931, %v1034
        %1067 = vst.msk [vmem:[%s310 + $0x1c] sm:$0xf] %vm931, %v1035
        %1068 = vst.msk [vmem:[%s310 + $0x20] sm:$0xf] %vm931, %v1036
        %1069 = vst.msk [vmem:[%s310 + $0x24] sm:$0xf] %vm931, %v1037
        %1070 = vst.msk [vmem:[%s310 + $0x28] sm:$0xf] %vm931, %v1038
        %1071 = vst.msk [vmem:[%s310 + $0x2c] sm:$0xf] %vm931, %v1039
        %1072 = vst.msk [vmem:[%s310 + $0x30] sm:$0xf] %vm931, %v1040
        %1073 = vst.msk [vmem:[%s310 + $0x34] sm:$0xf] %vm931, %v1041
        %1074 = vst.msk [vmem:[%s310 + $0x38] sm:$0xf] %vm931, %v1042
        %1075 = vst.msk [vmem:[%s310 + $0x3c] sm:$0xf] %vm931, %v1043
        %1076 = vst.msk [vmem:[%s310 + $0x40] sm:$0xf] %vm931, %v1044
        %1077 = vst.msk [vmem:[%s310 + $0x44] sm:$0xf] %vm931, %v1045
        %1078 = vst.msk [vmem:[%s310 + $0x48] sm:$0xf] %vm931, %v1046
        %1079 = vst.msk [vmem:[%s310 + $0x4c] sm:$0xf] %vm931, %v1047
        %1080 = vst.msk [vmem:[%s310 + $0x50] sm:$0xf] %vm931, %v1048
        %1081 = vst.msk [vmem:[%s310 + $0x54] sm:$0xf] %vm931, %v1049
        %1082 = vst.msk [vmem:[%s310 + $0x58] sm:$0xf] %vm931, %v1050
        %1083 = vst.msk [vmem:[%s310 + $0x5c] sm:$0xf] %vm931, %v1051
        %1084 = vst.msk [vmem:[%s310 + $0x60] sm:$0xf] %vm931, %v1052
        %1085 = vst.msk [vmem:[%s310 + $0x64] sm:$0xf] %vm931, %v1053
        %1086 = vst.msk [vmem:[%s310 + $0x68] sm:$0xf] %vm931, %v1054
        %1087 = vst.msk [vmem:[%s310 + $0x6c] sm:$0xf] %vm931, %v1055
        %1088 = vst.msk [vmem:[%s310 + $0x70] sm:$0xf] %vm931, %v1056
        %1089 = vst.msk [vmem:[%s310 + $0x74] sm:$0xf] %vm931, %v1057
        %1090 = vst.msk [vmem:[%s310 + $0x78] sm:$0xf] %vm931, %v1058
        %1091 = vst.msk [vmem:[%s310 + $0x7c] sm:$0xf] %vm931, %v1059
        %1124 = vrot.lane.b32.xlu0 %v899, 64
        %v1125 = vpop.permute.xlu0 %1124
        %1126 = vrot.lane.b32.xlu0 %v900, 64
        %v1127 = vpop.permute.xlu0 %1126
        %1128 = vrot.lane.b32.xlu0 %v901, 64
        %v1129 = vpop.permute.xlu0 %1128
        %1130 = vrot.lane.b32.xlu0 %v902, 64
        %v1131 = vpop.permute.xlu0 %1130
        %1132 = vrot.lane.b32.xlu0 %v903, 64
        %v1133 = vpop.permute.xlu0 %1132
        %1134 = vrot.lane.b32.xlu0 %v904, 64
        %v1135 = vpop.permute.xlu0 %1134
        %1136 = vrot.lane.b32.xlu0 %v905, 64
        %v1137 = vpop.permute.xlu0 %1136
        %1138 = vrot.lane.b32.xlu0 %v906, 64
        %v1139 = vpop.permute.xlu0 %1138
        %1140 = vrot.lane.b32.xlu0 %v907, 64
        %v1141 = vpop.permute.xlu0 %1140
        %1142 = vrot.lane.b32.xlu0 %v908, 64
        %v1143 = vpop.permute.xlu0 %1142
        %1144 = vrot.lane.b32.xlu0 %v909, 64
        %v1145 = vpop.permute.xlu0 %1144
        %1146 = vrot.lane.b32.xlu0 %v910, 64
        %v1147 = vpop.permute.xlu0 %1146
        %1148 = vrot.lane.b32.xlu0 %v911, 64
        %v1149 = vpop.permute.xlu0 %1148
        %1150 = vrot.lane.b32.xlu0 %v912, 64
        %v1151 = vpop.permute.xlu0 %1150
        %1152 = vrot.lane.b32.xlu0 %v913, 64
        %v1153 = vpop.permute.xlu0 %1152
        %1154 = vrot.lane.b32.xlu0 %v914, 64
        %v1155 = vpop.permute.xlu0 %1154
        %1156 = vrot.lane.b32.xlu0 %v915, 64
        %v1157 = vpop.permute.xlu0 %1156
        %1158 = vrot.lane.b32.xlu0 %v916, 64
        %v1159 = vpop.permute.xlu0 %1158
        %1160 = vrot.lane.b32.xlu0 %v917, 64
        %v1161 = vpop.permute.xlu0 %1160
        %1162 = vrot.lane.b32.xlu0 %v918, 64
        %v1163 = vpop.permute.xlu0 %1162
        %1164 = vrot.lane.b32.xlu0 %v919, 64
        %v1165 = vpop.permute.xlu0 %1164
        %1166 = vrot.lane.b32.xlu0 %v920, 64
        %v1167 = vpop.permute.xlu0 %1166
        %1168 = vrot.lane.b32.xlu0 %v921, 64
        %v1169 = vpop.permute.xlu0 %1168
        %1170 = vrot.lane.b32.xlu0 %v922, 64
        %v1171 = vpop.permute.xlu0 %1170
        %1172 = vrot.lane.b32.xlu0 %v923, 64
        %v1173 = vpop.permute.xlu0 %1172
        %1174 = vrot.lane.b32.xlu0 %v924, 64
        %v1175 = vpop.permute.xlu0 %1174
        %1176 = vrot.lane.b32.xlu0 %v925, 64
        %v1177 = vpop.permute.xlu0 %1176
        %1178 = vrot.lane.b32.xlu0 %v926, 64
        %v1179 = vpop.permute.xlu0 %1178
        %1180 = vrot.lane.b32.xlu0 %v927, 64
        %v1181 = vpop.permute.xlu0 %1180
        %1182 = vrot.lane.b32.xlu0 %v928, 64
        %v1183 = vpop.permute.xlu0 %1182
        %1184 = vrot.lane.b32.xlu0 %v929, 64
        %v1185 = vpop.permute.xlu0 %1184
        %1186 = vrot.lane.b32.xlu0 %v930, 64
        %v1187 = vpop.permute.xlu0 %1186
        %s1220 = scalar_lea.vmem %s290, 128
        %1221 = vst.msk [vmem:[%s1220] sm:$0xf] %vm931, %v1125
        %1222 = vst.msk [vmem:[%s1220 + $0x4] sm:$0xf] %vm931, %v1127
        %1223 = vst.msk [vmem:[%s1220 + $0x8] sm:$0xf] %vm931, %v1129
        %1224 = vst.msk [vmem:[%s1220 + $0xc] sm:$0xf] %vm931, %v1131
        %1225 = vst.msk [vmem:[%s1220 + $0x10] sm:$0xf] %vm931, %v1133
        %1226 = vst.msk [vmem:[%s1220 + $0x14] sm:$0xf] %vm931, %v1135
        %1227 = vst.msk [vmem:[%s1220 + $0x18] sm:$0xf] %vm931, %v1137
        %1228 = vst.msk [vmem:[%s1220 + $0x1c] sm:$0xf] %vm931, %v1139
        %1229 = vst.msk [vmem:[%s1220 + $0x20] sm:$0xf] %vm931, %v1141
        %1230 = vst.msk [vmem:[%s1220 + $0x24] sm:$0xf] %vm931, %v1143
        %1231 = vst.msk [vmem:[%s1220 + $0x28] sm:$0xf] %vm931, %v1145
        %1232 = vst.msk [vmem:[%s1220 + $0x2c] sm:$0xf] %vm931, %v1147
        %1233 = vst.msk [vmem:[%s1220 + $0x30] sm:$0xf] %vm931, %v1149
        %1234 = vst.msk [vmem:[%s1220 + $0x34] sm:$0xf] %vm931, %v1151
        %1235 = vst.msk [vmem:[%s1220 + $0x38] sm:$0xf] %vm931, %v1153
        %1236 = vst.msk [vmem:[%s1220 + $0x3c] sm:$0xf] %vm931, %v1155
        %1237 = vst.msk [vmem:[%s1220 + $0x40] sm:$0xf] %vm931, %v1157
        %1238 = vst.msk [vmem:[%s1220 + $0x44] sm:$0xf] %vm931, %v1159
        %1239 = vst.msk [vmem:[%s1220 + $0x48] sm:$0xf] %vm931, %v1161
        %1240 = vst.msk [vmem:[%s1220 + $0x4c] sm:$0xf] %vm931, %v1163
        %1241 = vst.msk [vmem:[%s1220 + $0x50] sm:$0xf] %vm931, %v1165
        %1242 = vst.msk [vmem:[%s1220 + $0x54] sm:$0xf] %vm931, %v1167
        %1243 = vst.msk [vmem:[%s1220 + $0x58] sm:$0xf] %vm931, %v1169
        %1244 = vst.msk [vmem:[%s1220 + $0x5c] sm:$0xf] %vm931, %v1171
        %1245 = vst.msk [vmem:[%s1220 + $0x60] sm:$0xf] %vm931, %v1173
        %1246 = vst.msk [vmem:[%s1220 + $0x64] sm:$0xf] %vm931, %v1175
        %1247 = vst.msk [vmem:[%s1220 + $0x68] sm:$0xf] %vm931, %v1177
        %1248 = vst.msk [vmem:[%s1220 + $0x6c] sm:$0xf] %vm931, %v1179
        %1249 = vst.msk [vmem:[%s1220 + $0x70] sm:$0xf] %vm931, %v1181
        %1250 = vst.msk [vmem:[%s1220 + $0x74] sm:$0xf] %vm931, %v1183
        %1251 = vst.msk [vmem:[%s1220 + $0x78] sm:$0xf] %vm931, %v1185
        %1252 = vst.msk [vmem:[%s1220 + $0x7c] sm:$0xf] %vm931, %v1187
        %1285 = vrot.lane.b32.xlu0 %v964, 64
        %v1286 = vpop.permute.xlu0 %1285
        %1287 = vrot.lane.b32.xlu0 %v965, 64
        %v1288 = vpop.permute.xlu0 %1287
        %1289 = vrot.lane.b32.xlu0 %v966, 64
        %v1290 = vpop.permute.xlu0 %1289
        %1291 = vrot.lane.b32.xlu0 %v967, 64
        %v1292 = vpop.permute.xlu0 %1291
        %1293 = vrot.lane.b32.xlu0 %v968, 64
        %v1294 = vpop.permute.xlu0 %1293
        %1295 = vrot.lane.b32.xlu0 %v969, 64
        %v1296 = vpop.permute.xlu0 %1295
        %1297 = vrot.lane.b32.xlu0 %v970, 64
        %v1298 = vpop.permute.xlu0 %1297
        %1299 = vrot.lane.b32.xlu0 %v971, 64
        %v1300 = vpop.permute.xlu0 %1299
        %1301 = vrot.lane.b32.xlu0 %v972, 64
        %v1302 = vpop.permute.xlu0 %1301
        %1303 = vrot.lane.b32.xlu0 %v973, 64
        %v1304 = vpop.permute.xlu0 %1303
        %1305 = vrot.lane.b32.xlu0 %v974, 64
        %v1306 = vpop.permute.xlu0 %1305
        %1307 = vrot.lane.b32.xlu0 %v975, 64
        %v1308 = vpop.permute.xlu0 %1307
        %1309 = vrot.lane.b32.xlu0 %v976, 64
        %v1310 = vpop.permute.xlu0 %1309
        %1311 = vrot.lane.b32.xlu0 %v977, 64
        %v1312 = vpop.permute.xlu0 %1311
        %1313 = vrot.lane.b32.xlu0 %v978, 64
        %v1314 = vpop.permute.xlu0 %1313
        %1315 = vrot.lane.b32.xlu0 %v979, 64
        %v1316 = vpop.permute.xlu0 %1315
        %1317 = vrot.lane.b32.xlu0 %v980, 64
        %v1318 = vpop.permute.xlu0 %1317
        %1319 = vrot.lane.b32.xlu0 %v981, 64
        %v1320 = vpop.permute.xlu0 %1319
        %1321 = vrot.lane.b32.xlu0 %v982, 64
        %v1322 = vpop.permute.xlu0 %1321
        %1323 = vrot.lane.b32.xlu0 %v983, 64
        %v1324 = vpop.permute.xlu0 %1323
        %1325 = vrot.lane.b32.xlu0 %v984, 64
        %v1326 = vpop.permute.xlu0 %1325
        %1327 = vrot.lane.b32.xlu0 %v985, 64
        %v1328 = vpop.permute.xlu0 %1327
        %1329 = vrot.lane.b32.xlu0 %v986, 64
        %v1330 = vpop.permute.xlu0 %1329
        %1331 = vrot.lane.b32.xlu0 %v987, 64
        %v1332 = vpop.permute.xlu0 %1331
        %1333 = vrot.lane.b32.xlu0 %v988, 64
        %v1334 = vpop.permute.xlu0 %1333
        %1335 = vrot.lane.b32.xlu0 %v989, 64
        %v1336 = vpop.permute.xlu0 %1335
        %1337 = vrot.lane.b32.xlu0 %v990, 64
        %v1338 = vpop.permute.xlu0 %1337
        %1339 = vrot.lane.b32.xlu0 %v991, 64
        %v1340 = vpop.permute.xlu0 %1339
        %1341 = vrot.lane.b32.xlu0 %v992, 64
        %v1342 = vpop.permute.xlu0 %1341
        %1343 = vrot.lane.b32.xlu0 %v993, 64
        %v1344 = vpop.permute.xlu0 %1343
        %1345 = vrot.lane.b32.xlu0 %v994, 64
        %v1346 = vpop.permute.xlu0 %1345
        %1347 = vrot.lane.b32.xlu0 %v995, 64
        %v1348 = vpop.permute.xlu0 %1347
        %s1381 = scalar_lea.vmem %s300, 128
        %1382 = vst.msk [vmem:[%s1381] sm:$0xf] %vm931, %v1286
        %1383 = vst.msk [vmem:[%s1381 + $0x4] sm:$0xf] %vm931, %v1288
        %1384 = vst.msk [vmem:[%s1381 + $0x8] sm:$0xf] %vm931, %v1290
        %1385 = vst.msk [vmem:[%s1381 + $0xc] sm:$0xf] %vm931, %v1292
        %1386 = vst.msk [vmem:[%s1381 + $0x10] sm:$0xf] %vm931, %v1294
        %1387 = vst.msk [vmem:[%s1381 + $0x14] sm:$0xf] %vm931, %v1296
        %1388 = vst.msk [vmem:[%s1381 + $0x18] sm:$0xf] %vm931, %v1298
        %1389 = vst.msk [vmem:[%s1381 + $0x1c] sm:$0xf] %vm931, %v1300
        %1390 = vst.msk [vmem:[%s1381 + $0x20] sm:$0xf] %vm931, %v1302
        %1391 = vst.msk [vmem:[%s1381 + $0x24] sm:$0xf] %vm931, %v1304
        %1392 = vst.msk [vmem:[%s1381 + $0x28] sm:$0xf] %vm931, %v1306
        %1393 = vst.msk [vmem:[%s1381 + $0x2c] sm:$0xf] %vm931, %v1308
        %1394 = vst.msk [vmem:[%s1381 + $0x30] sm:$0xf] %vm931, %v1310
        %1395 = vst.msk [vmem:[%s1381 + $0x34] sm:$0xf] %vm931, %v1312
        %1396 = vst.msk [vmem:[%s1381 + $0x38] sm:$0xf] %vm931, %v1314
        %1397 = vst.msk [vmem:[%s1381 + $0x3c] sm:$0xf] %vm931, %v1316
        %1398 = vst.msk [vmem:[%s1381 + $0x40] sm:$0xf] %vm931, %v1318
        %1399 = vst.msk [vmem:[%s1381 + $0x44] sm:$0xf] %vm931, %v1320
        %1400 = vst.msk [vmem:[%s1381 + $0x48] sm:$0xf] %vm931, %v1322
        %1401 = vst.msk [vmem:[%s1381 + $0x4c] sm:$0xf] %vm931, %v1324
        %1402 = vst.msk [vmem:[%s1381 + $0x50] sm:$0xf] %vm931, %v1326
        %1403 = vst.msk [vmem:[%s1381 + $0x54] sm:$0xf] %vm931, %v1328
        %1404 = vst.msk [vmem:[%s1381 + $0x58] sm:$0xf] %vm931, %v1330
        %1405 = vst.msk [vmem:[%s1381 + $0x5c] sm:$0xf] %vm931, %v1332
        %1406 = vst.msk [vmem:[%s1381 + $0x60] sm:$0xf] %vm931, %v1334
        %1407 = vst.msk [vmem:[%s1381 + $0x64] sm:$0xf] %vm931, %v1336
        %1408 = vst.msk [vmem:[%s1381 + $0x68] sm:$0xf] %vm931, %v1338
        %1409 = vst.msk [vmem:[%s1381 + $0x6c] sm:$0xf] %vm931, %v1340
        %1410 = vst.msk [vmem:[%s1381 + $0x70] sm:$0xf] %vm931, %v1342
        %1411 = vst.msk [vmem:[%s1381 + $0x74] sm:$0xf] %vm931, %v1344
        %1412 = vst.msk [vmem:[%s1381 + $0x78] sm:$0xf] %vm931, %v1346
        %1413 = vst.msk [vmem:[%s1381 + $0x7c] sm:$0xf] %vm931, %v1348
        %1446 = vrot.lane.b32.xlu0 %v1028, 64
        %v1447 = vpop.permute.xlu0 %1446
        %1448 = vrot.lane.b32.xlu0 %v1029, 64
        %v1449 = vpop.permute.xlu0 %1448
        %1450 = vrot.lane.b32.xlu0 %v1030, 64
        %v1451 = vpop.permute.xlu0 %1450
        %1452 = vrot.lane.b32.xlu0 %v1031, 64
        %v1453 = vpop.permute.xlu0 %1452
        %1454 = vrot.lane.b32.xlu0 %v1032, 64
        %v1455 = vpop.permute.xlu0 %1454
        %1456 = vrot.lane.b32.xlu0 %v1033, 64
        %v1457 = vpop.permute.xlu0 %1456
        %1458 = vrot.lane.b32.xlu0 %v1034, 64
        %v1459 = vpop.permute.xlu0 %1458
        %1460 = vrot.lane.b32.xlu0 %v1035, 64
        %v1461 = vpop.permute.xlu0 %1460
        %1462 = vrot.lane.b32.xlu0 %v1036, 64
        %v1463 = vpop.permute.xlu0 %1462
        %1464 = vrot.lane.b32.xlu0 %v1037, 64
        %v1465 = vpop.permute.xlu0 %1464
        %1466 = vrot.lane.b32.xlu0 %v1038, 64
        %v1467 = vpop.permute.xlu0 %1466
        %1468 = vrot.lane.b32.xlu0 %v1039, 64
        %v1469 = vpop.permute.xlu0 %1468
        %1470 = vrot.lane.b32.xlu0 %v1040, 64
        %v1471 = vpop.permute.xlu0 %1470
        %1472 = vrot.lane.b32.xlu0 %v1041, 64
        %v1473 = vpop.permute.xlu0 %1472
        %1474 = vrot.lane.b32.xlu0 %v1042, 64
        %v1475 = vpop.permute.xlu0 %1474
        %1476 = vrot.lane.b32.xlu0 %v1043, 64
        %v1477 = vpop.permute.xlu0 %1476
        %1478 = vrot.lane.b32.xlu0 %v1044, 64
        %v1479 = vpop.permute.xlu0 %1478
        %1480 = vrot.lane.b32.xlu0 %v1045, 64
        %v1481 = vpop.permute.xlu0 %1480
        %1482 = vrot.lane.b32.xlu0 %v1046, 64
        %v1483 = vpop.permute.xlu0 %1482
        %1484 = vrot.lane.b32.xlu0 %v1047, 64
        %v1485 = vpop.permute.xlu0 %1484
        %1486 = vrot.lane.b32.xlu0 %v1048, 64
        %v1487 = vpop.permute.xlu0 %1486
        %1488 = vrot.lane.b32.xlu0 %v1049, 64
        %v1489 = vpop.permute.xlu0 %1488
        %1490 = vrot.lane.b32.xlu0 %v1050, 64
        %v1491 = vpop.permute.xlu0 %1490
        %1492 = vrot.lane.b32.xlu0 %v1051, 64
        %v1493 = vpop.permute.xlu0 %1492
        %1494 = vrot.lane.b32.xlu0 %v1052, 64
        %v1495 = vpop.permute.xlu0 %1494
        %1496 = vrot.lane.b32.xlu0 %v1053, 64
        %v1497 = vpop.permute.xlu0 %1496
        %1498 = vrot.lane.b32.xlu0 %v1054, 64
        %v1499 = vpop.permute.xlu0 %1498
        %1500 = vrot.lane.b32.xlu0 %v1055, 64
        %v1501 = vpop.permute.xlu0 %1500
        %1502 = vrot.lane.b32.xlu0 %v1056, 64
        %v1503 = vpop.permute.xlu0 %1502
        %1504 = vrot.lane.b32.xlu0 %v1057, 64
        %v1505 = vpop.permute.xlu0 %1504
        %1506 = vrot.lane.b32.xlu0 %v1058, 64
        %v1507 = vpop.permute.xlu0 %1506
        %1508 = vrot.lane.b32.xlu0 %v1059, 64
        %v1509 = vpop.permute.xlu0 %1508
        %s1542 = scalar_lea.vmem %s310, 128
        %1543 = vst.msk [vmem:[%s1542] sm:$0xf] %vm931, %v1447
        %1544 = vst.msk [vmem:[%s1542 + $0x4] sm:$0xf] %vm931, %v1449
        %1545 = vst.msk [vmem:[%s1542 + $0x8] sm:$0xf] %vm931, %v1451
        %1546 = vst.msk [vmem:[%s1542 + $0xc] sm:$0xf] %vm931, %v1453
        %1547 = vst.msk [vmem:[%s1542 + $0x10] sm:$0xf] %vm931, %v1455
        %1548 = vst.msk [vmem:[%s1542 + $0x14] sm:$0xf] %vm931, %v1457
        %1549 = vst.msk [vmem:[%s1542 + $0x18] sm:$0xf] %vm931, %v1459
        %1550 = vst.msk [vmem:[%s1542 + $0x1c] sm:$0xf] %vm931, %v1461
        %1551 = vst.msk [vmem:[%s1542 + $0x20] sm:$0xf] %vm931, %v1463
        %1552 = vst.msk [vmem:[%s1542 + $0x24] sm:$0xf] %vm931, %v1465
        %1553 = vst.msk [vmem:[%s1542 + $0x28] sm:$0xf] %vm931, %v1467
        %1554 = vst.msk [vmem:[%s1542 + $0x2c] sm:$0xf] %vm931, %v1469
        %1555 = vst.msk [vmem:[%s1542 + $0x30] sm:$0xf] %vm931, %v1471
        %1556 = vst.msk [vmem:[%s1542 + $0x34] sm:$0xf] %vm931, %v1473
        %1557 = vst.msk [vmem:[%s1542 + $0x38] sm:$0xf] %vm931, %v1475
        %1558 = vst.msk [vmem:[%s1542 + $0x3c] sm:$0xf] %vm931, %v1477
        %1559 = vst.msk [vmem:[%s1542 + $0x40] sm:$0xf] %vm931, %v1479
        %1560 = vst.msk [vmem:[%s1542 + $0x44] sm:$0xf] %vm931, %v1481
        %1561 = vst.msk [vmem:[%s1542 + $0x48] sm:$0xf] %vm931, %v1483
        %1562 = vst.msk [vmem:[%s1542 + $0x4c] sm:$0xf] %vm931, %v1485
        %1563 = vst.msk [vmem:[%s1542 + $0x50] sm:$0xf] %vm931, %v1487
        %1564 = vst.msk [vmem:[%s1542 + $0x54] sm:$0xf] %vm931, %v1489
        %1565 = vst.msk [vmem:[%s1542 + $0x58] sm:$0xf] %vm931, %v1491
        %1566 = vst.msk [vmem:[%s1542 + $0x5c] sm:$0xf] %vm931, %v1493
        %1567 = vst.msk [vmem:[%s1542 + $0x60] sm:$0xf] %vm931, %v1495
        %1568 = vst.msk [vmem:[%s1542 + $0x64] sm:$0xf] %vm931, %v1497
        %1569 = vst.msk [vmem:[%s1542 + $0x68] sm:$0xf] %vm931, %v1499
        %1570 = vst.msk [vmem:[%s1542 + $0x6c] sm:$0xf] %vm931, %v1501
        %1571 = vst.msk [vmem:[%s1542 + $0x70] sm:$0xf] %vm931, %v1503
        %1572 = vst.msk [vmem:[%s1542 + $0x74] sm:$0xf] %vm931, %v1505
        %1573 = vst.msk [vmem:[%s1542 + $0x78] sm:$0xf] %vm931, %v1507
        %1574 = vst.msk [vmem:[%s1542 + $0x7c] sm:$0xf] %vm931, %v1509
        %s1575 = smul.u32 32, %s25
        %p1576 = scmp.lt.s32.totalorder %s24, 1
        %s1577 = scalar_select %p1576, %s24, 1
        %p1578 = scmp.lt.s32.totalorder %s1575, 31
        %s1579 = scalar_select %p1578, %s1575, 31
        %s1580 = smul.addr %s1577, 64
        %s1581 = sadd.s32 %s1579, %s1580
        %s1582 = smul.addr %s1581, 4
        %s1583 = scalar_lea.vmem %s2, %s1582
        %s1584 = smul.u32 32, %s25
        %p1585 = scmp.lt.s32.totalorder %s24, 1
        %s1586 = scalar_select %p1585, %s24, 1
        %p1587 = scmp.lt.s32.totalorder %s1584, 31
        %s1588 = scalar_select %p1587, %s1584, 31
        %s1589 = smul.addr %s1586, 64
        %s1590 = sadd.s32 %s1588, %s1589
        %s1591 = smul.addr %s1590, 4
        %s1592 = scalar_lea.vmem %s3, %s1591
        %s1593 = smul.u32 32, %s25
        %p1594 = scmp.lt.s32.totalorder %s24, 1
        %s1595 = scalar_select %p1594, %s24, 1
        %p1596 = scmp.lt.s32.totalorder %s1593, 31
        %s1597 = scalar_select %p1596, %s1593, 31
        %s1598 = smul.addr %s1595, 64
        %s1599 = sadd.s32 %s1597, %s1598
        %s1600 = smul.addr %s1599, 4
        %s1601 = scalar_lea.vmem %s4, %s1600
        // Predicated region
        $region37: #{tpu_custom_call.1} parent=27 // pred_check
          %p1602 = pneg %p101
        $region38: #{tpu_custom_call.1} parent=27 // pred_check_branch
          %1604 = sbr.rel (%p1602) target = $region40
        $region39: #{tpu_custom_call.1} parent=27 // pred_region
          %s1605 = smul.u32 32, %s25
        $region40: #{tpu_custom_call.1} parent=27 // pred_fallthru
          _
        // Predicated region
        $region41: #{tpu_custom_call.1} parent=27 // pred_check
          %p1606 = pneg %p129
        $region42: #{tpu_custom_call.1} parent=27 // pred_check_branch
          %1608 = sbr.rel (%p1606) target = $region44
        $region43: #{tpu_custom_call.1} parent=27 // pred_region
          %s1609 = smul.u32 32, %s25
        $region44: #{tpu_custom_call.1} parent=27 // pred_fallthru
          _
        // Predicated region
        $region45: #{tpu_custom_call.1} parent=27 // pred_check
          %p1610 = pneg %p157
        $region46: #{tpu_custom_call.1} parent=27 // pred_check_branch
          %1612 = sbr.rel (%p1610) target = $region48
        $region47: #{tpu_custom_call.1} parent=27 // pred_region
          %s1613 = smul.u32 32, %s25
        $region48: #{tpu_custom_call.1} parent=27 // pred_fallthru
          _
      $region28: #{tpu_custom_call.1} parent=5 // pred_fallthru
        _
      %p1614 = scmp.le.s32.totalorder 2, %s15
      // Predicated region
      $region49: #{tpu_custom_call.1} parent=5 // pred_check
        %p1615 = pneg %p1614
      $region50: #{tpu_custom_call.1} parent=5 // pred_check_branch
        %1617 = sbr.rel (%p1615) target = $region52
      $region51: #{tpu_custom_call.1} parent=5 // pred_region
        %s1618 = ssub.s32 %s15, 2
        // Predicated region
        $region53: #{tpu_custom_call.1} parent=51 // pred_check
          %p1619 = pneg %p107
        $region54: #{tpu_custom_call.1} parent=51 // pred_check_branch
          %1621 = sbr.rel (%p1619) target = $region56
        $region55: #{tpu_custom_call.1} parent=51 // pred_region
          %s1622 = smul.u32 32, %s27
          %p1623 = scmp.lt.s32.totalorder %s26, 1
          %s1624 = scalar_select %p1623, %s26, 1
          %p1625 = scmp.lt.s32.totalorder %s1622, 31
          %s1626 = scalar_select %p1625, %s1622, 31
          %s1627 = smul.addr %s1624, 64
          %s1628 = sadd.s32 %s1626, %s1627
          %s1629 = smul.addr %s1628, 4
          %s1630 = scalar_lea.vmem %s2, %s1629
        $region56: #{tpu_custom_call.1} parent=51 // pred_fallthru
          _
        // Predicated region
        $region57: #{tpu_custom_call.1} parent=51 // pred_check
          %p1631 = pneg %p135
        $region58: #{tpu_custom_call.1} parent=51 // pred_check_branch
          %1633 = sbr.rel (%p1631) target = $region60
        $region59: #{tpu_custom_call.1} parent=51 // pred_region
          %s1634 = smul.u32 32, %s27
          %p1635 = scmp.lt.s32.totalorder %s26, 1
          %s1636 = scalar_select %p1635, %s26, 1
          %p1637 = scmp.lt.s32.totalorder %s1634, 31
          %s1638 = scalar_select %p1637, %s1634, 31
          %s1639 = smul.addr %s1636, 64
          %s1640 = sadd.s32 %s1638, %s1639
          %s1641 = smul.addr %s1640, 4
          %s1642 = scalar_lea.vmem %s3, %s1641
        $region60: #{tpu_custom_call.1} parent=51 // pred_fallthru
          _
        // Predicated region
        $region61: #{tpu_custom_call.1} parent=51 // pred_check
          %p1643 = pneg %p163
        $region62: #{tpu_custom_call.1} parent=51 // pred_check_branch
          %1645 = sbr.rel (%p1643) target = $region64
        $region63: #{tpu_custom_call.1} parent=51 // pred_region
          %s1646 = smul.u32 32, %s27
          %p1647 = scmp.lt.s32.totalorder %s26, 1
          %s1648 = scalar_select %p1647, %s26, 1
          %p1649 = scmp.lt.s32.totalorder %s1646, 31
          %s1650 = scalar_select %p1649, %s1646, 31
          %s1651 = smul.addr %s1648, 64
          %s1652 = sadd.s32 %s1650, %s1651
          %s1653 = smul.addr %s1652, 4
          %s1654 = scalar_lea.vmem %s4, %s1653
        $region64: #{tpu_custom_call.1} parent=51 // pred_fallthru
          _
      $region52: #{tpu_custom_call.1} parent=5 // pred_fallthru
        _
    $region6: #{tpu_custom_call.1} parent=1 // loop_footer
      %s19 = sadd.s32 1, %s15
    $region7: #{tpu_custom_call.1} parent=1 // loop_footer_branch
      %14 = sbr.rel target = $region3
    $region8: #{tpu_custom_call.1} parent=1 // loop_exit
      _
    %1655 = vsyncpa [#allocation3], 1
    %s1656 = scalar_lea.sflag [#allocation3], 1
    %1657 = vsyncpa %s1656, 1
    %1658 = vsyncpa [#allocation5], 1

</llo_original>
